<compile_context>
chip_gen: v5e
topology: v5e:2x2
jax: 0.10.0
libtpu: 0.0.40
codegen_flags: <defaults>
</compile_context>

<pallas_src>
import functools

import jax
import jax.numpy as jnp
from jax.experimental import pallas as pl
from jax.experimental.pallas import tpu as pltpu


def _round_up(x, m):
    return (x + m - 1) // m * m


def _classifier_kernel(x_ref,                       # (bn, ts, C)      f32
                       w1_ref, c1_ref,              # (C, 1024) bf16 / (1, 1024) f32
                       w2_ref, c2_ref,              # (1024, 512) bf16 / (1, 512) f32
                       w3_ref, b3_ref,              # (512, Kp) bf16 / (1, Kp) f32
                       out_ref,                     # (bn, Kp)         f32
                       acc_ref,                     # (bn, C)          f32 scratch
                       *, inv_hw):
    s = pl.program_id(1)

    @pl.when(s == 0)
    def _init():
        acc_ref[...] = jnp.zeros_like(acc_ref)

    # Partial spatial sum for this tile (channels-last => sublane-axis reduce,
    # result already lane-major in C for the MXU).
    acc_ref[...] += jnp.sum(x_ref[...], axis=1)

    @pl.when(s == pl.num_programs(1) - 1)
    def _finalize():
        # Average pool: 1/(H*W) applied once to the tiny (bn, C) tile.
        pooled = (acc_ref[...] * inv_hw).astype(jnp.bfloat16)

        # fc1 (+ folded BN1) + ReLU   (Dropout = identity in eval mode)
        h1 = jnp.dot(pooled, w1_ref[...], preferred_element_type=jnp.float32)
        h1 = jnp.maximum(h1 + c1_ref[...], 0.0)

        # fc2 (+ folded BN2) + ReLU
        h2 = jnp.dot(h1.astype(jnp.bfloat16), w2_ref[...],
                     preferred_element_type=jnp.float32)
        h2 = jnp.maximum(h2 + c2_ref[...], 0.0)

        # fc3 (logits, padded to a lane-dense width)
        out = jnp.dot(h2.astype(jnp.bfloat16), w3_ref[...],
                      preferred_element_type=jnp.float32)
        out_ref[...] = (out + b3_ref[...]).astype(out_ref.dtype)


def classifier_forward(x_nchw, folded, *, spatial_tile=512, batch_tile=256,
                       x_vmem_budget_bytes=8 << 20):
    """x_nchw: (N, C, H, W) f32; `folded` from fold_params(). Returns (N, n_classes) f32."""
    N, C, H, W = x_nchw.shape
    HW = H * W

    w1, c1 = folded["w1"], folded["c1"]
    w2, c2 = folded["w2"], folded["c2"]
    w3, b3 = folded["w3"], folded["b3"]
    K = w3.shape[1]
    Kp = _round_up(K, 128)                          # lane-dense logits store
    w3p = jnp.pad(w3, ((0, 0), (0, Kp - K)))
    b3p = jnp.pad(b3, ((0, 0), (0, Kp - K)))

    # Channels-last: spatial on sublanes (cheap reduce), channels on lanes (MXU-ready).
    # TODO(synk): if the producing conv stack already emits NHWC, pass it straight
    # through and skip this transpose.
    x = jnp.transpose(x_nchw, (0, 2, 3, 1)).reshape(N, HW, C)

    # ---- spatial tiling (reduction axis, innermost / "arbitrary") ----
    if HW <= spatial_tile:
        ts = _round_up(HW, 8)
    else:
        ts = _round_up(spatial_tile, 8)
    HW_pad = _round_up(HW, ts)

    # ---- batch tiling ("parallel" axis); keep double-buffered x tiles in budget ----
    itemsize = x.dtype.itemsize
    row_bytes = ts * max(C, 128) * itemsize
    max_bn = max(1, x_vmem_budget_bytes // (2 * row_bytes))
    bn = min(N, batch_tile, max_bn)
    if bn < N:
        bn = max(8, (bn // 8) * 8)                  # tiled batch blocks must be 8-aligned
        N_pad = _round_up(N, bn)
    else:
        bn = N
        N_pad = N

    if N_pad != N or HW_pad != HW:
        x = jnp.pad(x, ((0, N_pad - N), (0, HW_pad - HW), (0, 0)))

    grid = (N_pad // bn, HW_pad // ts)

    # ---- VMEM budget: double-buffered x/out blocks + resident weights + scratch ----
    const_args = (w1, c1, w2, c2, w3p, b3p)
    param_bytes = sum(int(p.size) * p.dtype.itemsize for p in const_args)
    vmem_need = (2 * bn * ts * max(C, 128) * itemsize   # x (double-buffered)
                 + 2 * param_bytes                      # weights/biases buffers
                 + 2 * bn * Kp * 4                      # output block
                 + bn * max(C, 128) * 4)                # accumulator scratch
    vmem_limit = min(int(vmem_need * 3 // 2) + (4 << 20), 64 << 20)   # fits v7x

    kernel = functools.partial(_classifier_kernel, inv_hw=1.0 / HW)

    out_pad = pl.pallas_call(
        kernel,
        out_shape=jax.ShapeDtypeStruct((N_pad, Kp), jnp.float32),
        grid_spec=pltpu.PrefetchScalarGridSpec(
            num_scalar_prefetch=0,
            grid=grid,
            in_specs=[
                pl.BlockSpec((bn, ts, C), lambda b, s: (b, s, 0)),   # streamed x
                pl.BlockSpec(w1.shape, lambda b, s: (0, 0)),         # resident weights
                pl.BlockSpec(c1.shape, lambda b, s: (0, 0)),
                pl.BlockSpec(w2.shape, lambda b, s: (0, 0)),
                pl.BlockSpec(c2.shape, lambda b, s: (0, 0)),
                pl.BlockSpec(w3p.shape, lambda b, s: (0, 0)),
                pl.BlockSpec(b3p.shape, lambda b, s: (0, 0)),
            ],
            out_specs=pl.BlockSpec((bn, Kp), lambda b, s: (b, 0)),
            scratch_shapes=[pltpu.VMEM((bn, C), jnp.float32)],
        ),
        compiler_params=pltpu.CompilerParams(
            dimension_semantics=("parallel", "arbitrary"),
            vmem_limit_bytes=vmem_limit,
        ),
    )(x, w1, c1, w2, c2, w3p, b3p)

    return out_pad[:N, :K]


def init_params(key, in_channels, n_classes, bn_eps=1e-5):
    """Deterministic synthetic parameters (shapes match the PyTorch module)."""
    k1, k2, k3, kb1, kb2, kb3 = jax.random.split(key, 6)

    def lin(kw, kb, fan_in, fan_out):
        # Weight stored as (in, out) so the kernel computes x @ W directly
        # (equivalent to PyTorch's x @ weight.T with weight of shape (out, in)).
        bound = 1.0 / jnp.sqrt(float(fan_in))
        w = jax.random.uniform(kw, (fan_in, fan_out), jnp.float32, -bound, bound)
        b = jax.random.uniform(kb, (1, fan_out), jnp.float32, -bound, bound)
        return w, b

    w1, b1 = lin(k1, kb1, in_channels, 1024)
    w2, b2 = lin(k2, kb2, 1024, 512)
    w3, b3 = lin(k3, kb3, 512, n_classes)

    # BatchNorm1d (eval mode) folded to scale/shift using PyTorch-default
    # buffers: running_mean = 0, running_var = 1, gamma = 1, beta = 0.
    def bn_fold(dim):
        gamma = jnp.ones((1, dim), jnp.float32)
        beta = jnp.zeros((1, dim), jnp.float32)
        mean = jnp.zeros((1, dim), jnp.float32)
        var = jnp.ones((1, dim), jnp.float32)
        scale = gamma / jnp.sqrt(var + bn_eps)
        shift = beta - mean * scale
        return scale, shift

    s1, t1 = bn_fold(1024)
    s2, t2 = bn_fold(512)

    return dict(w1=w1, b1=b1, s1=s1, t1=t1,
                w2=w2, b2=b2, s2=s2, t2=t2,
                w3=w3, b3=b3)


def fold_params(params, weight_dtype=jnp.bfloat16):
    """Fold the eval-mode BatchNorms into the Linear layers and cast weights to bf16
    (the kernel accumulates in f32 on the MXU)."""
    w1f = (params["w1"] * params["s1"]).astype(weight_dtype)
    c1 = (params["b1"] * params["s1"] + params["t1"]).astype(jnp.float32)
    w2f = (params["w2"] * params["s2"]).astype(weight_dtype)
    c2 = (params["b2"] * params["s2"] + params["t2"]).astype(jnp.float32)
    w3f = params["w3"].astype(weight_dtype)
    b3f = params["b3"].astype(jnp.float32)
    return dict(w1=w1f, c1=c1, w2=w2f, c2=c2, w3=w3f, b3=b3f)


def reference_forward(x_nchw, params):
    """Pure-JAX f32 reference for correctness checking."""
    N, C, H, W = x_nchw.shape
    pooled = jnp.mean(x_nchw.reshape(N, C, H * W), axis=-1)
    h1 = pooled @ params["w1"] + params["b1"]
    h1 = jnp.maximum(h1 * params["s1"] + params["t1"], 0.0)
    h2 = h1 @ params["w2"] + params["b2"]
    h2 = jnp.maximum(h2 * params["s2"] + params["t2"], 0.0)
    return h2 @ params["w3"] + params["b3"]


if __name__ == "__main__":
    key = jax.random.PRNGKey(0)
    kx, kp = jax.random.split(key)

    N, C, H, W = 2, 4, 16, 16
    n_classes = 10

    x = jax.random.normal(kx, (N, C, H, W), jnp.float32)
    params = init_params(kp, in_channels=C, n_classes=n_classes)
    folded = fold_params(params)

    # 1) Small shape from the spec; spatial_tile=64 => grid (1, 4), exercising the
    #    multi-step spatial accumulator path.
    out = jax.block_until_ready(classifier_forward(x, folded, spatial_tile=64))
    ref = reference_forward(x, params)
    assert out.shape == (N, n_classes), out.shape
    err = float(jnp.max(jnp.abs(out - ref)))
    assert jnp.allclose(out, ref, atol=2e-2, rtol=2e-2), err

    # 2) Exercise batch tiling (parallel axis) + accumulator reuse: grid (2, 2).
    N2 = 16
    x2 = jax.random.normal(kx, (N2, C, H, W), jnp.float32)
    out2 = jax.block_until_ready(
        classifier_forward(x2, folded, spatial_tile=128, batch_tile=8))
    ref2 = reference_forward(x2, params)
    assert out2.shape == (N2, n_classes), out2.shape
    err2 = float(jnp.max(jnp.abs(out2 - ref2)))
    assert jnp.allclose(out2, ref2, atol=2e-2, rtol=2e-2), err2

    print("KERNEL_OK")
</pallas_src>

<mosaic_0001>
module attributes {stable_mosaic.version = 11 : i64} {
  func.func @_classifier_kernel(%arg0: i32, %arg1: i32, %arg2: memref<2x64x4xf32, #tpu.memory_space<vmem>>, %arg3: memref<4x1024xbf16, #tpu.memory_space<vmem>>, %arg4: memref<1x1024xf32, #tpu.memory_space<vmem>>, %arg5: memref<1024x512xbf16, #tpu.memory_space<vmem>>, %arg6: memref<1x512xf32, #tpu.memory_space<vmem>>, %arg7: memref<512x128xbf16, #tpu.memory_space<vmem>>, %arg8: memref<1x128xf32, #tpu.memory_space<vmem>>, %arg9: memref<2x128xf32, #tpu.memory_space<vmem>>, %arg10: memref<2x4xf32, #tpu.memory_space<vmem>>) attributes {dimension_semantics = [#tpu.dimension_semantics<parallel>, #tpu.dimension_semantics<arbitrary>], iteration_bounds = array<i64: 1, 4>, scalar_prefetch = 0 : i64, scratch_operands = 1 : i64, tpu.core_type = #tpu.core_type<tc>, window_params = [{transform_indices = @transform_0, window_bounds = array<i64: 2, 64, 4>}, {pipeline_mode = #tpu.pipeline_mode<synchronous>, transform_indices = @transform_1, window_bounds = array<i64: 4, 1024>}, {pipeline_mode = #tpu.pipeline_mode<synchronous>, transform_indices = @transform_2, window_bounds = array<i64: 1, 1024>}, {pipeline_mode = #tpu.pipeline_mode<synchronous>, transform_indices = @transform_3, window_bounds = array<i64: 1024, 512>}, {pipeline_mode = #tpu.pipeline_mode<synchronous>, transform_indices = @transform_4, window_bounds = array<i64: 1, 512>}, {pipeline_mode = #tpu.pipeline_mode<synchronous>, transform_indices = @transform_5, window_bounds = array<i64: 512, 128>}, {pipeline_mode = #tpu.pipeline_mode<synchronous>, transform_indices = @transform_6, window_bounds = array<i64: 1, 128>}, {transform_indices = @transform_7, window_bounds = array<i64: 2, 128>}]} {
    %c0_i32 = arith.constant 0 : i32
    %0 = arith.cmpi eq, %arg1, %c0_i32 : i32
    %1 = arith.extui %0 : i1 to i32
    %c0_i32_0 = arith.constant 0 : i32
    %2 = arith.cmpi ne, %1, %c0_i32_0 : i32
    scf.if %2 {
      %cst_8 = arith.constant 0.000000e+00 : f32
      %11 = vector.broadcast %cst_8 : f32 to vector<2x4xf32>
      %c0_9 = arith.constant 0 : index
      %c0_10 = arith.constant 0 : index
      %12 = vector.load %arg10[%c0_9, %c0_10] : memref<2x4xf32, #tpu.memory_space<vmem>>, vector<2x4xf32>
      tpu.vector_store %arg10[%c0_9, %c0_10], %11 {strides = array<i32>} : memref<2x4xf32, #tpu.memory_space<vmem>>, vector<2x4xf32>,
    } else {
    }
    %c0 = arith.constant 0 : index
    %c0_1 = arith.constant 0 : index
    %3 = vector.load %arg10[%c0, %c0_1] : memref<2x4xf32, #tpu.memory_space<vmem>>, vector<2x4xf32>
    %c0_2 = arith.constant 0 : index
    %c0_3 = arith.constant 0 : index
    %c0_4 = arith.constant 0 : index
    %4 = vector.load %arg2[%c0_2, %c0_3, %c0_4] : memref<2x64x4xf32, #tpu.memory_space<vmem>>, vector<2x64x4xf32>
    %cst = arith.constant dense<0.000000e+00> : vector<2x4xf32>
    %5 = vector.multi_reduction <add>, %4, %cst [1] : vector<2x64x4xf32> to vector<2x4xf32>
    %6 = arith.addf %3, %5 : vector<2x4xf32>
    %c0_5 = arith.constant 0 : index
    %c0_6 = arith.constant 0 : index
    %7 = vector.load %arg10[%c0_5, %c0_6] : memref<2x4xf32, #tpu.memory_space<vmem>>, vector<2x4xf32>
    tpu.vector_store %arg10[%c0_5, %c0_6], %6 {strides = array<i32>} : memref<2x4xf32, #tpu.memory_space<vmem>>, vector<2x4xf32>,
    %c3_i32 = arith.constant 3 : i32
    %8 = arith.cmpi eq, %arg1, %c3_i32 : i32
    %9 = arith.extui %8 : i1 to i32
    %c0_i32_7 = arith.constant 0 : i32
    %10 = arith.cmpi ne, %9, %c0_i32_7 : i32
    scf.if %10 {
      %c0_8 = arith.constant 0 : index
      %c0_9 = arith.constant 0 : index
      %11 = vector.load %arg10[%c0_8, %c0_9] : memref<2x4xf32, #tpu.memory_space<vmem>>, vector<2x4xf32>
      %cst_10 = arith.constant 3.906250e-03 : f32
      %12 = vector.broadcast %cst_10 : f32 to vector<2x4xf32>
      %13 = arith.mulf %11, %12 : vector<2x4xf32>
      %14 = arith.truncf %13 : vector<2x4xf32> to vector<2x4xbf16>
      %c0_11 = arith.constant 0 : index
      %c0_12 = arith.constant 0 : index
      %15 = vector.load %arg3[%c0_11, %c0_12] : memref<4x1024xbf16, #tpu.memory_space<vmem>>, vector<4x1024xbf16>
      %cst_13 = arith.constant dense<0.000000e+00> : vector<2x1024xf32>
      %16 = tpu.matmul %14, %15, %cst_13 {dimension_numbers = #tpu.dot_dimension_numbers<[1], [0], [0], [1], [0, 0, 1, 1], [], []>} : vector<2x4xbf16>, vector<4x1024xbf16>, vector<2x1024xf32> -> vector<2x1024xf32>
      %c0_14 = arith.constant 0 : index
      %c0_15 = arith.constant 0 : index
      %17 = vector.load %arg4[%c0_14, %c0_15] : memref<1x1024xf32, #tpu.memory_space<vmem>>, vector<1x1024xf32>
      %18 = vector.broadcast %17 : vector<1x1024xf32> to vector<2x1024xf32>
      %19 = arith.addf %16, %18 : vector<2x1024xf32>
      %cst_16 = arith.constant 0.000000e+00 : f32
      %20 = vector.broadcast %cst_16 : f32 to vector<2x1024xf32>
      %21 = arith.maximumf %19, %20 : vector<2x1024xf32>
      %22 = arith.truncf %21 : vector<2x1024xf32> to vector<2x1024xbf16>
      %c0_17 = arith.constant 0 : index
      %c0_18 = arith.constant 0 : index
      %23 = vector.load %arg5[%c0_17, %c0_18] : memref<1024x512xbf16, #tpu.memory_space<vmem>>, vector<1024x512xbf16>
      %cst_19 = arith.constant dense<0.000000e+00> : vector<2x512xf32>
      %24 = tpu.matmul %22, %23, %cst_19 {dimension_numbers = #tpu.dot_dimension_numbers<[1], [0], [0], [1], [0, 0, 1, 1], [], []>} : vector<2x1024xbf16>, vector<1024x512xbf16>, vector<2x512xf32> -> vector<2x512xf32>
      %c0_20 = arith.constant 0 : index
      %c0_21 = arith.constant 0 : index
      %25 = vector.load %arg6[%c0_20, %c0_21] : memref<1x512xf32, #tpu.memory_space<vmem>>, vector<1x512xf32>
      %26 = vector.broadcast %25 : vector<1x512xf32> to vector<2x512xf32>
      %27 = arith.addf %24, %26 : vector<2x512xf32>
      %cst_22 = arith.constant 0.000000e+00 : f32
      %28 = vector.broadcast %cst_22 : f32 to vector<2x512xf32>
      %29 = arith.maximumf %27, %28 : vector<2x512xf32>
      %30 = arith.truncf %29 : vector<2x512xf32> to vector<2x512xbf16>
      %c0_23 = arith.constant 0 : index
      %c0_24 = arith.constant 0 : index
      %31 = vector.load %arg7[%c0_23, %c0_24] : memref<512x128xbf16, #tpu.memory_space<vmem>>, vector<512x128xbf16>
      %cst_25 = arith.constant dense<0.000000e+00> : vector<2x128xf32>
      %32 = tpu.matmul %30, %31, %cst_25 {dimension_numbers = #tpu.dot_dimension_numbers<[1], [0], [0], [1], [0, 0, 1, 1], [], []>} : vector<2x512xbf16>, vector<512x128xbf16>, vector<2x128xf32> -> vector<2x128xf32>
      %c0_26 = arith.constant 0 : index
      %c0_27 = arith.constant 0 : index
      %33 = vector.load %arg8[%c0_26, %c0_27] : memref<1x128xf32, #tpu.memory_space<vmem>>, vector<1x128xf32>
      %34 = vector.broadcast %33 : vector<1x128xf32> to vector<2x128xf32>
      %35 = arith.addf %32, %34 : vector<2x128xf32>
      %c0_28 = arith.constant 0 : index
      %c0_29 = arith.constant 0 : index
      %36 = vector.load %arg9[%c0_28, %c0_29] : memref<2x128xf32, #tpu.memory_space<vmem>>, vector<2x128xf32>
      tpu.vector_store %arg9[%c0_28, %c0_29], %35 {strides = array<i32>} : memref<2x128xf32, #tpu.memory_space<vmem>>, vector<2x128xf32>,
    } else {
    }
    return
  }
  func.func @transform_0(%arg0: i32, %arg1: i32) -> (i32, i32, i32) {
    %c0_i32 = arith.constant 0 : i32
    %c0_i32_0 = arith.constant 0 : i32
    return %arg0, %arg1, %c0_i32 : i32, i32, i32
  }
  func.func @transform_1(%arg0: i32, %arg1: i32) -> (i32, i32) {
    %c0_i32 = arith.constant 0 : i32
    %c0_i32_0 = arith.constant 0 : i32
    %c0_i32_1 = arith.constant 0 : i32
    return %c0_i32, %c0_i32_0 : i32, i32
  }
  func.func @transform_2(%arg0: i32, %arg1: i32) -> (i32, i32) {
    %c0_i32 = arith.constant 0 : i32
    %c0_i32_0 = arith.constant 0 : i32
    %c0_i32_1 = arith.constant 0 : i32
    return %c0_i32, %c0_i32_0 : i32, i32
  }
  func.func @transform_3(%arg0: i32, %arg1: i32) -> (i32, i32) {
    %c0_i32 = arith.constant 0 : i32
    %c0_i32_0 = arith.constant 0 : i32
    %c0_i32_1 = arith.constant 0 : i32
    return %c0_i32, %c0_i32_0 : i32, i32
  }
  func.func @transform_4(%arg0: i32, %arg1: i32) -> (i32, i32) {
    %c0_i32 = arith.constant 0 : i32
    %c0_i32_0 = arith.constant 0 : i32
    %c0_i32_1 = arith.constant 0 : i32
    return %c0_i32, %c0_i32_0 : i32, i32
  }
  func.func @transform_5(%arg0: i32, %arg1: i32) -> (i32, i32) {
    %c0_i32 = arith.constant 0 : i32
    %c0_i32_0 = arith.constant 0 : i32
    %c0_i32_1 = arith.constant 0 : i32
    return %c0_i32, %c0_i32_0 : i32, i32
  }
  func.func @transform_6(%arg0: i32, %arg1: i32) -> (i32, i32) {
    %c0_i32 = arith.constant 0 : i32
    %c0_i32_0 = arith.constant 0 : i32
    %c0_i32_1 = arith.constant 0 : i32
    return %c0_i32, %c0_i32_0 : i32, i32
  }
  func.func @transform_7(%arg0: i32, %arg1: i32) -> (i32, i32) {
    %c0_i32 = arith.constant 0 : i32
    %c0_i32_0 = arith.constant 0 : i32
    return %arg0, %c0_i32 : i32, i32
  }
}

</mosaic_0001>

<llo_original>
// kernel: tpu_custom_call.1
$region0: #{tpu_custom_call.1}
  #allocation0 [shape = 'u32[]', space=smem, size = 0x4, offset = 0x4, fixed_abs, tag = 'smem constant byte address 0x4 - core index']
  #allocation1 [shape = 'u32[72,128]{1,0:T(1,128)}', space=vmem, size = 0x9000, scoped, tag = 'internal scratch']
  #allocation2 [shape = 'f32[2,4]{1,0:T(2,128)}', space=vmem, size = 0x400, scoped, tag = 'scratch operand']
  %s0 = inlined_call_operand.vmem [shape: f32[2,256,4], index: 0, kind: input, shape index: {}]
  %s1 = inlined_call_operand.vmem [shape: bf16[4,1024], index: 1, kind: input, shape index: {}]
  %s2 = inlined_call_operand.vmem [shape: f32[1,1024], index: 2, kind: input, shape index: {}]
  %s3 = inlined_call_operand.hbm [shape: bf16[1024,512], index: 3, kind: input, shape index: {}]
  %s4 = inlined_call_operand.vmem [shape: f32[1,512], index: 4, kind: input, shape index: {}]
  %s5 = inlined_call_operand.vmem [shape: bf16[512,128], index: 5, kind: input, shape index: {}]
  %s6 = inlined_call_operand.vmem [shape: f32[1,128], index: 6, kind: input, shape index: {}]
  %s7 = inlined_call_operand.hbm [shape: f32[2,128], index: 7, kind: output, shape index: {}]
  %s8 = sld [smem:[#allocation0]]
  $region111: #{tpu_custom_call.1} parent=0
    _
  %s10 = ssub.s32 1, %s8
  %s11 = scalar_select 0, %s10, %s8
  $region1: #{tpu_custom_call.1} parent=0
    #allocation3 [shape = 'u8[131072]{0}', space=vmem, size = 0x20000, scoped, tag = 'input window, operand 0']
    #allocation4 [shape = 'u8[1048576]{0}', space=vmem, size = 0x100000, scoped, tag = 'input window, operand 3, single buffered']
    #allocation5 [shape = 's32[2]{0}', space=sflag, size = 0x8, scoped, tag = 'scoped memory for tpu_custom_call.1']
    #allocation6 [shape = 's32[2]{0}', space=sflag, size = 0x8, scoped, tag = 'scoped memory for tpu_custom_call.1']
    #allocation7 [shape = 'u8[1024]{0}', space=vmem, size = 0x400, scoped, tag = 'output window, operand 0, single buffered']
    %12 = vsyncpa [#allocation5], 0
    %13 = vsyncpa [#allocation6], 0
    loop: start=0, step=1, limit=6
    $region2: #{tpu_custom_call.1} parent=1 // loop_pre_header
      _
    $region3: #{tpu_custom_call.1} parent=1 // loop_header
      %s15 = sphi 0, %s19
      %p16 = scmp.ge.s32.totalorder %s15, 6
      %s22 = sphi 0, %s34
      %s23 = sphi 0, %s30
      %s24 = sphi 0, %s22
      %s25 = sphi 0, %s23
      %s26 = sphi 0, %s24
      %s27 = sphi 0, %s25
      %s39 = sphi 0, %s41
      %s42 = sphi 0, %s39
      %s43 = sphi 0, %s42
      %s59 = sphi 0, %s43
      %s63 = sphi 0, %s63
      %s65 = sphi 0, %s63
      %s66 = sphi 0, %s65
      %s80 = sphi 0, %s66
      %s84 = sphi 0, %s84
      %s86 = sphi 0, %s84
      %s87 = sphi 0, %s86
      %s101 = sphi 0, %s87
      %s105 = sphi 0, %s105
      %s107 = sphi 0, %s105
      %s108 = sphi 0, %s107
      %s122 = sphi 0, %s108
      %s126 = sphi 0, %s126
      %s128 = sphi 0, %s126
      %s129 = sphi 0, %s128
      %s143 = sphi 0, %s129
      %s147 = sphi 0, %s147
      %s149 = sphi 0, %s147
      %s150 = sphi 0, %s149
      %s164 = sphi 0, %s150
      %s168 = sphi 0, %s168
      %s170 = sphi 0, %s168
      %s171 = sphi 0, %s170
      %s185 = sphi 0, %s171
      %s191 = sphi 0, %s193
      %s194 = sphi 0, %s191
      %s195 = sphi 0, %s194
      %s211 = sphi 0, %s195
    $region4: #{tpu_custom_call.1} parent=1 // loop_header_branch
      %18 = sbr.rel (%p16) target = $region8
    $region5: #{tpu_custom_call.1} parent=1 // loop_body
      %s20 = ssub.s32 %s15, 1
      %s21 = ssub.s32 %s15, 2
      %s28 = sadd.s32 1, %s23
      %p29 = scmp.ge.s32.totalorder %s28, 4
      %s30 = scalar_select %p29, 0, %s28
      %s31 = sadd.s32 1, %s22
      %s32 = scalar_select %p29, %s31, %s22
      %p33 = scmp.ge.s32.totalorder %s32, 1
      %s34 = scalar_select %p33, 0, %s32
      %s35 = ssub.s32 %s22, %s34
      %s36 = ssub.s32 %s23, %s30
      %s37 = sor.u32 %s35, %s36
      %p38 = scmp.eq.s32.totalorder %s37, 0
      %s40 = sadd.s32 %s39, 1
      %s41 = scalar_select %p38, %s39, %s40
      %p44 = pneg %p38
      %p45 = scmp.eq.s32.totalorder %s15, 3
      %p46 = por %p44, %p45
      %p47 = scmp.ne.s32.totalorder %s39, %s42
      %p48 = scmp.eq.s32.totalorder %s15, 0
      %p49 = por %p47, %p48
      %p50 = scmp.ne.s32.totalorder %s39, %s42
      %p51 = scmp.eq.s32.totalorder %s20, 3
      %p52 = por %p50, %p51
      %p53 = scmp.ne.s32.totalorder %s42, %s43
      %p54 = scmp.eq.s32.totalorder %s20, 0
      %p55 = por %p53, %p54
      %p56 = scmp.ne.s32.totalorder %s42, %s43
      %p57 = scmp.eq.s32.totalorder %s21, 3
      %p58 = por %p56, %p57
      %p60 = scmp.ne.s32.totalorder %s43, %s59
      %p61 = scmp.eq.s32.totalorder %s21, 0
      %p62 = por %p60, %p61
      %s64 = sadd.s32 %s63, 1
      %p67 = scmp.eq.s32.totalorder %s15, 3
      %p68 = scmp.ne.s32.totalorder %s63, %s65
      %p69 = scmp.eq.s32.totalorder %s15, 0
      %p70 = por %p68, %p69
      %p71 = scmp.ne.s32.totalorder %s63, %s65
      %p72 = scmp.eq.s32.totalorder %s20, 3
      %p73 = por %p71, %p72
      %p74 = scmp.ne.s32.totalorder %s65, %s66
      %p75 = scmp.eq.s32.totalorder %s20, 0
      %p76 = por %p74, %p75
      %p77 = scmp.ne.s32.totalorder %s65, %s66
      %p78 = scmp.eq.s32.totalorder %s21, 3
      %p79 = por %p77, %p78
      %p81 = scmp.ne.s32.totalorder %s66, %s80
      %p82 = scmp.eq.s32.totalorder %s21, 0
      %p83 = por %p81, %p82
      %s85 = sadd.s32 %s84, 1
      %p88 = scmp.eq.s32.totalorder %s15, 3
      %p89 = scmp.ne.s32.totalorder %s84, %s86
      %p90 = scmp.eq.s32.totalorder %s15, 0
      %p91 = por %p89, %p90
      %p92 = scmp.ne.s32.totalorder %s84, %s86
      %p93 = scmp.eq.s32.totalorder %s20, 3
      %p94 = por %p92, %p93
      %p95 = scmp.ne.s32.totalorder %s86, %s87
      %p96 = scmp.eq.s32.totalorder %s20, 0
      %p97 = por %p95, %p96
      %p98 = scmp.ne.s32.totalorder %s86, %s87
      %p99 = scmp.eq.s32.totalorder %s21, 3
      %p100 = por %p98, %p99
      %p102 = scmp.ne.s32.totalorder %s87, %s101
      %p103 = scmp.eq.s32.totalorder %s21, 0
      %p104 = por %p102, %p103
      %s106 = sadd.s32 %s105, 1
      %p109 = scmp.eq.s32.totalorder %s15, 3
      %p110 = scmp.ne.s32.totalorder %s105, %s107
      %p111 = scmp.eq.s32.totalorder %s15, 0
      %p112 = por %p110, %p111
      %p113 = scmp.ne.s32.totalorder %s105, %s107
      %p114 = scmp.eq.s32.totalorder %s20, 3
      %p115 = por %p113, %p114
      %p116 = scmp.ne.s32.totalorder %s107, %s108
      %p117 = scmp.eq.s32.totalorder %s20, 0
      %p118 = por %p116, %p117
      %p119 = scmp.ne.s32.totalorder %s107, %s108
      %p120 = scmp.eq.s32.totalorder %s21, 3
      %p121 = por %p119, %p120
      %p123 = scmp.ne.s32.totalorder %s108, %s122
      %p124 = scmp.eq.s32.totalorder %s21, 0
      %p125 = por %p123, %p124
      %s127 = sadd.s32 %s126, 1
      %p130 = scmp.eq.s32.totalorder %s15, 3
      %p131 = scmp.ne.s32.totalorder %s126, %s128
      %p132 = scmp.eq.s32.totalorder %s15, 0
      %p133 = por %p131, %p132
      %p134 = scmp.ne.s32.totalorder %s126, %s128
      %p135 = scmp.eq.s32.totalorder %s20, 3
      %p136 = por %p134, %p135
      %p137 = scmp.ne.s32.totalorder %s128, %s129
      %p138 = scmp.eq.s32.totalorder %s20, 0
      %p139 = por %p137, %p138
      %p140 = scmp.ne.s32.totalorder %s128, %s129
      %p141 = scmp.eq.s32.totalorder %s21, 3
      %p142 = por %p140, %p141
      %p144 = scmp.ne.s32.totalorder %s129, %s143
      %p145 = scmp.eq.s32.totalorder %s21, 0
      %p146 = por %p144, %p145
      %s148 = sadd.s32 %s147, 1
      %p151 = scmp.eq.s32.totalorder %s15, 3
      %p152 = scmp.ne.s32.totalorder %s147, %s149
      %p153 = scmp.eq.s32.totalorder %s15, 0
      %p154 = por %p152, %p153
      %p155 = scmp.ne.s32.totalorder %s147, %s149
      %p156 = scmp.eq.s32.totalorder %s20, 3
      %p157 = por %p155, %p156
      %p158 = scmp.ne.s32.totalorder %s149, %s150
      %p159 = scmp.eq.s32.totalorder %s20, 0
      %p160 = por %p158, %p159
      %p161 = scmp.ne.s32.totalorder %s149, %s150
      %p162 = scmp.eq.s32.totalorder %s21, 3
      %p163 = por %p161, %p162
      %p165 = scmp.ne.s32.totalorder %s150, %s164
      %p166 = scmp.eq.s32.totalorder %s21, 0
      %p167 = por %p165, %p166
      %s169 = sadd.s32 %s168, 1
      %p172 = scmp.eq.s32.totalorder %s15, 3
      %p173 = scmp.ne.s32.totalorder %s168, %s170
      %p174 = scmp.eq.s32.totalorder %s15, 0
      %p175 = por %p173, %p174
      %p176 = scmp.ne.s32.totalorder %s168, %s170
      %p177 = scmp.eq.s32.totalorder %s20, 3
      %p178 = por %p176, %p177
      %p179 = scmp.ne.s32.totalorder %s170, %s171
      %p180 = scmp.eq.s32.totalorder %s20, 0
      %p181 = por %p179, %p180
      %p182 = scmp.ne.s32.totalorder %s170, %s171
      %p183 = scmp.eq.s32.totalorder %s21, 3
      %p184 = por %p182, %p183
      %p186 = scmp.ne.s32.totalorder %s171, %s185
      %p187 = scmp.eq.s32.totalorder %s21, 0
      %p188 = por %p186, %p187
      %s189 = ssub.s32 %s22, %s34
      %p190 = scmp.eq.s32.totalorder %s189, 0
      %s192 = sadd.s32 %s191, 1
      %s193 = scalar_select %p190, %s191, %s192
      %p196 = pneg %p190
      %p197 = scmp.eq.s32.totalorder %s15, 3
      %p198 = por %p196, %p197
      %p199 = scmp.ne.s32.totalorder %s191, %s194
      %p200 = scmp.eq.s32.totalorder %s15, 0
      %p201 = por %p199, %p200
      %p202 = scmp.ne.s32.totalorder %s191, %s194
      %p203 = scmp.eq.s32.totalorder %s20, 3
      %p204 = por %p202, %p203
      %p205 = scmp.ne.s32.totalorder %s194, %s195
      %p206 = scmp.eq.s32.totalorder %s20, 0
      %p207 = por %p205, %p206
      %p208 = scmp.ne.s32.totalorder %s194, %s195
      %p209 = scmp.eq.s32.totalorder %s21, 3
      %p210 = por %p208, %p209
      %p212 = scmp.ne.s32.totalorder %s195, %s211
      %p213 = scmp.eq.s32.totalorder %s21, 0
      %p214 = por %p212, %p213
      %p215 = scmp.le.s32.totalorder 1, %s15
      %p216 = scmp.lt.s32.totalorder %s15, 5
      %p217 = pnand %p215, %p216
      %p218 = pneg %p217
      // Predicated region
      $region9: #{tpu_custom_call.1} parent=5 // pred_check
        _
      $region10: #{tpu_custom_call.1} parent=5 // pred_check_branch
        %220 = sbr.rel (%p217) target = $region12
      $region11: #{tpu_custom_call.1} parent=5 // pred_region
        %s221 = ssub.s32 %s15, 1
        // Predicated region
        $region13: #{tpu_custom_call.1} parent=11 // pred_check
          %p222 = pneg %p76
        $region14: #{tpu_custom_call.1} parent=11 // pred_check_branch
          %224 = sbr.rel (%p222) target = $region16
        $region15: #{tpu_custom_call.1} parent=11 // pred_region
          _
        $region16: #{tpu_custom_call.1} parent=11 // pred_fallthru
          _
        // Predicated region
        $region17: #{tpu_custom_call.1} parent=11 // pred_check
          %p225 = pneg %p97
        $region18: #{tpu_custom_call.1} parent=11 // pred_check_branch
          %227 = sbr.rel (%p225) target = $region20
        $region19: #{tpu_custom_call.1} parent=11 // pred_region
          _
        $region20: #{tpu_custom_call.1} parent=11 // pred_fallthru
          _
        // Predicated region
        $region21: #{tpu_custom_call.1} parent=11 // pred_check
          %p228 = pneg %p118
        $region22: #{tpu_custom_call.1} parent=11 // pred_check_branch
          %230 = sbr.rel (%p228) target = $region24
        $region23: #{tpu_custom_call.1} parent=11 // pred_region
          %232 = vsyncadd [#allocation5], 0
          %s233 = sshll.u32 %s3, 4
          %s234 = int_to_ptr.hbm [resolvable:$true] %s233
          %s235 = sshll.u32 [#allocation4], 4
          %s236 = int_to_ptr.vmem [resolvable:$true] %s235
          %241 = dma.hbm_to_vmem [thread:$0]  %s234, 32768, %s236, [#allocation5], 256, 256, 16
        $region24: #{tpu_custom_call.1} parent=11 // pred_fallthru
          _
        // Predicated region
        $region25: #{tpu_custom_call.1} parent=11 // pred_check
          %p242 = pneg %p139
        $region26: #{tpu_custom_call.1} parent=11 // pred_check_branch
          %244 = sbr.rel (%p242) target = $region28
        $region27: #{tpu_custom_call.1} parent=11 // pred_region
          _
        $region28: #{tpu_custom_call.1} parent=11 // pred_fallthru
          _
        // Predicated region
        $region29: #{tpu_custom_call.1} parent=11 // pred_check
          %p245 = pneg %p160
        $region30: #{tpu_custom_call.1} parent=11 // pred_check_branch
          %247 = sbr.rel (%p245) target = $region32
        $region31: #{tpu_custom_call.1} parent=11 // pred_region
          _
        $region32: #{tpu_custom_call.1} parent=11 // pred_fallthru
          _
        // Predicated region
        $region33: #{tpu_custom_call.1} parent=11 // pred_check
          %p248 = pneg %p181
        $region34: #{tpu_custom_call.1} parent=11 // pred_check_branch
          %250 = sbr.rel (%p248) target = $region36
        $region35: #{tpu_custom_call.1} parent=11 // pred_region
          _
        $region36: #{tpu_custom_call.1} parent=11 // pred_fallthru
          _
      $region12: #{tpu_custom_call.1} parent=5 // pred_fallthru
        _
      %p251 = scmp.lt.s32.totalorder %s15, 4
      // Predicated region
      $region37: #{tpu_custom_call.1} parent=5 // pred_check
        %p252 = pneg %p251
      $region38: #{tpu_custom_call.1} parent=5 // pred_check_branch
        %254 = sbr.rel (%p252) target = $region40
      $region39: #{tpu_custom_call.1} parent=5 // pred_region
        // Predicated region
        $region41: #{tpu_custom_call.1} parent=39 // pred_check
          %p255 = pneg %p49
        $region42: #{tpu_custom_call.1} parent=39 // pred_check_branch
          %257 = sbr.rel (%p255) target = $region44
        $region43: #{tpu_custom_call.1} parent=39 // pred_region
          %s258 = sand.u32 %s39, 1
          %s259 = sand.u32 %s39, 1
          %s260 = smul.addr %s259, 128
          %s261 = scalar_lea.vmem [#allocation3], %s260
          %s262 = smul.u32 2, %s22
          %s263 = smul.u32 8, %s23
          %s264 = smul.addr %s262, 32
          %s265 = sadd.s32 %s263, %s264
          %s266 = smul.addr %s265, 8
          %s267 = scalar_lea.vmem %s0, %s266
          // Predicated region
          $region45: #{tpu_custom_call.1} parent=43 // pred_check
            _
          $region46: #{tpu_custom_call.1} parent=43 // pred_check_branch
            %269 = sbr.rel (0) target = $region48
          $region47: #{tpu_custom_call.1} parent=43 // pred_region
            // Predicated region
            $region49: #{tpu_custom_call.1} parent=47 // pred_check
              _
            $region50: #{tpu_custom_call.1} parent=47 // pred_check_branch
              %271 = sbr.rel (0) target = $region52
            $region51: #{tpu_custom_call.1} parent=47 // pred_region
              // Predicated region
              $region64: #{tpu_custom_call.1} parent=51 // pred_check
                _
              $region65: #{tpu_custom_call.1} parent=51 // pred_check_branch
                %317 = sbr.rel (0) target = $region67
              $region66: #{tpu_custom_call.1} parent=51 // pred_region
                loop: start=0, step=1, limit=1
                $region68: #{tpu_custom_call.1} parent=66 // loop_pre_header
                  _
                $region69: #{tpu_custom_call.1} parent=66 // loop_header
                  %s319 = sphi 0, %s323
                  %p320 = scmp.ge.s32.totalorder %s319, 1
                  %s324 = sphi %s267, %s267
                  %s325 = sphi %s261, %s261
                $region70: #{tpu_custom_call.1} parent=66 // loop_header_branch
                  %322 = sbr.rel (%p320) target = $region74
                $region71: #{tpu_custom_call.1} parent=66 // loop_body
                  %v326 = vld [vmem:[%s324] sm:$0xff]
                  %327 = vst [vmem:[%s325] sm:$0xff] %v326
                  %v328 = vld [vmem:[%s324 + $0x8] sm:$0xff]
                  %329 = vst [vmem:[%s325 + $0x8] sm:$0xff] %v328
                  %v330 = vld [vmem:[%s324 + $0x10] sm:$0xff]
                  %331 = vst [vmem:[%s325 + $0x10] sm:$0xff] %v330
                  %v332 = vld [vmem:[%s324 + $0x18] sm:$0xff]
                  %333 = vst [vmem:[%s325 + $0x18] sm:$0xff] %v332
                  %v334 = vld [vmem:[%s324 + $0x20] sm:$0xff]
                  %335 = vst [vmem:[%s325 + $0x20] sm:$0xff] %v334
                  %v336 = vld [vmem:[%s324 + $0x28] sm:$0xff]
                  %337 = vst [vmem:[%s325 + $0x28] sm:$0xff] %v336
                  %v338 = vld [vmem:[%s324 + $0x30] sm:$0xff]
                  %339 = vst [vmem:[%s325 + $0x30] sm:$0xff] %v338
                  %v340 = vld [vmem:[%s324 + $0x38] sm:$0xff]
                  %341 = vst [vmem:[%s325 + $0x38] sm:$0xff] %v340
                  %v342 = vld [vmem:[%s324 + $0x100] sm:$0xff]
                  %343 = vst [vmem:[%s325 + $0x40] sm:$0xff] %v342
                  %v344 = vld [vmem:[%s324 + $0x108] sm:$0xff]
                  %345 = vst [vmem:[%s325 + $0x48] sm:$0xff] %v344
                  %v346 = vld [vmem:[%s324 + $0x110] sm:$0xff]
                  %347 = vst [vmem:[%s325 + $0x50] sm:$0xff] %v346
                  %v348 = vld [vmem:[%s324 + $0x118] sm:$0xff]
                  %349 = vst [vmem:[%s325 + $0x58] sm:$0xff] %v348
                  %v350 = vld [vmem:[%s324 + $0x120] sm:$0xff]
                  %351 = vst [vmem:[%s325 + $0x60] sm:$0xff] %v350
                  %v352 = vld [vmem:[%s324 + $0x128] sm:$0xff]
                  %353 = vst [vmem:[%s325 + $0x68] sm:$0xff] %v352
                  %v354 = vld [vmem:[%s324 + $0x130] sm:$0xff]
                  %355 = vst [vmem:[%s325 + $0x70] sm:$0xff] %v354
                  %v356 = vld [vmem:[%s324 + $0x138] sm:$0xff]
                  %357 = vst [vmem:[%s325 + $0x78] sm:$0xff] %v356
                $region72: #{tpu_custom_call.1} parent=66 // loop_footer
                  %s323 = sadd.s32 1, %s319
                $region73: #{tpu_custom_call.1} parent=66 // loop_footer_branch
                  %318 = sbr.rel target = $region69
                $region74: #{tpu_custom_call.1} parent=66 // loop_exit
                  _
              $region67: #{tpu_custom_call.1} parent=51 // pred_fallthru
                _
              // Predicated region
              $region75: #{tpu_custom_call.1} parent=51 // pred_check
                _
              $region76: #{tpu_custom_call.1} parent=51 // pred_check_branch
                %359 = sbr.rel target = $region78
              $region77: #{tpu_custom_call.1} parent=51 // pred_region
                _
              $region78: #{tpu_custom_call.1} parent=51 // pred_fallthru
                _
            $region52: #{tpu_custom_call.1} parent=47 // pred_fallthru
              _
            // Predicated region
            $region53: #{tpu_custom_call.1} parent=47 // pred_check
              _
            $region54: #{tpu_custom_call.1} parent=47 // pred_check_branch
              %273 = sbr.rel target = $region56
            $region55: #{tpu_custom_call.1} parent=47 // pred_region
              %s275 = ssub.s32 256, 1
              loop: start=0, step=1, limit=1
              $region57: #{tpu_custom_call.1} parent=55 // loop_pre_header
                _
              $region58: #{tpu_custom_call.1} parent=55 // loop_header
                %s277 = sphi 0, %s281
                %p278 = scmp.ge.s32.totalorder %s277, 1
                %s282 = sphi %s267, %s267
                %s283 = sphi %s261, %s261
              $region59: #{tpu_custom_call.1} parent=55 // loop_header_branch
                %280 = sbr.rel (%p278) target = $region63
              $region60: #{tpu_custom_call.1} parent=55 // loop_body
                %v284 = vld [vmem:[%s282] sm:%s275]
                %285 = vst [vmem:[%s283] sm:%s275] %v284
                %v286 = vld [vmem:[%s282 + $0x8] sm:%s275]
                %287 = vst [vmem:[%s283 + $0x8] sm:%s275] %v286
                %v288 = vld [vmem:[%s282 + $0x10] sm:%s275]
                %289 = vst [vmem:[%s283 + $0x10] sm:%s275] %v288
                %v290 = vld [vmem:[%s282 + $0x18] sm:%s275]
                %291 = vst [vmem:[%s283 + $0x18] sm:%s275] %v290
                %v292 = vld [vmem:[%s282 + $0x20] sm:%s275]
                %293 = vst [vmem:[%s283 + $0x20] sm:%s275] %v292
                %v294 = vld [vmem:[%s282 + $0x28] sm:%s275]
                %295 = vst [vmem:[%s283 + $0x28] sm:%s275] %v294
                %v296 = vld [vmem:[%s282 + $0x30] sm:%s275]
                %297 = vst [vmem:[%s283 + $0x30] sm:%s275] %v296
                %v298 = vld [vmem:[%s282 + $0x38] sm:%s275]
                %299 = vst [vmem:[%s283 + $0x38] sm:%s275] %v298
                %v300 = vld [vmem:[%s282 + $0x100] sm:%s275]
                %301 = vst [vmem:[%s283 + $0x40] sm:%s275] %v300
                %v302 = vld [vmem:[%s282 + $0x108] sm:%s275]
                %303 = vst [vmem:[%s283 + $0x48] sm:%s275] %v302
                %v304 = vld [vmem:[%s282 + $0x110] sm:%s275]
                %305 = vst [vmem:[%s283 + $0x50] sm:%s275] %v304
                %v306 = vld [vmem:[%s282 + $0x118] sm:%s275]
                %307 = vst [vmem:[%s283 + $0x58] sm:%s275] %v306
                %v308 = vld [vmem:[%s282 + $0x120] sm:%s275]
                %309 = vst [vmem:[%s283 + $0x60] sm:%s275] %v308
                %v310 = vld [vmem:[%s282 + $0x128] sm:%s275]
                %311 = vst [vmem:[%s283 + $0x68] sm:%s275] %v310
                %v312 = vld [vmem:[%s282 + $0x130] sm:%s275]
                %313 = vst [vmem:[%s283 + $0x70] sm:%s275] %v312
                %v314 = vld [vmem:[%s282 + $0x138] sm:%s275]
                %315 = vst [vmem:[%s283 + $0x78] sm:%s275] %v314
              $region61: #{tpu_custom_call.1} parent=55 // loop_footer
                %s281 = sadd.s32 1, %s277
              $region62: #{tpu_custom_call.1} parent=55 // loop_footer_branch
                %276 = sbr.rel target = $region58
              $region63: #{tpu_custom_call.1} parent=55 // loop_exit
                _
            $region56: #{tpu_custom_call.1} parent=47 // pred_fallthru
              _
          $region48: #{tpu_custom_call.1} parent=43 // pred_fallthru
            _
          %360 = vnop
        $region44: #{tpu_custom_call.1} parent=39 // pred_fallthru
          _
      $region40: #{tpu_custom_call.1} parent=5 // pred_fallthru
        _
      %p361 = scmp.le.s32.totalorder 1, %s15
      %p362 = scmp.lt.s32.totalorder %s15, 5
      %p363 = pnand %p361, %p362
      %p364 = pneg %p363
      // Predicated region
      $region79: #{tpu_custom_call.1} parent=5 // pred_check
        _
      $region80: #{tpu_custom_call.1} parent=5 // pred_check_branch
        %366 = sbr.rel (%p363) target = $region82
      $region81: #{tpu_custom_call.1} parent=5 // pred_region
        %s367 = ssub.s32 %s15, 1
        %s368 = sand.u32 %s42, 1
        %s369 = sand.u32 %s42, 1
        %s370 = smul.addr %s369, 128
        %s371 = scalar_lea.vmem [#allocation3], %s370
        // Predicated region
        $region83: #{tpu_custom_call.1} parent=81 // pred_check
          %p372 = pneg %p55
        $region84: #{tpu_custom_call.1} parent=81 // pred_check_branch
          %374 = sbr.rel (%p372) target = $region86
        $region85: #{tpu_custom_call.1} parent=81 // pred_region
          _
        $region86: #{tpu_custom_call.1} parent=81 // pred_fallthru
          _
        // Predicated region
        $region87: #{tpu_custom_call.1} parent=81 // pred_check
          %p375 = pneg %p118
        $region88: #{tpu_custom_call.1} parent=81 // pred_check_branch
          %377 = sbr.rel (%p375) target = $region90
        $region89: #{tpu_custom_call.1} parent=81 // pred_region
          %379 = dma.done [#allocation5], 32768
        $region90: #{tpu_custom_call.1} parent=81 // pred_fallthru
          _
        %s380 = sand.u32 %s42, 1
        %s381 = sand.u32 %s42, 1
        %s382 = smul.addr %s381, 128
        %s383 = scalar_lea.vmem [#allocation3], %s382
        %p384 = pneg %p55
        %p385 = pneg %p52
        %p386 = pneg %p76
        %p387 = pneg %p73
        %p388 = pneg %p97
        %p389 = pneg %p94
        %p390 = pneg %p118
        %p391 = pneg %p115
        %p392 = pneg %p139
        %p393 = pneg %p136
        %p394 = pneg %p160
        %p395 = pneg %p157
        %p396 = pneg %p181
        %p397 = pneg %p178
        %p398 = pneg %p207
        %p399 = pneg %p204
        %s400 = smul.u32 2, %s24
        %s401 = smul.u32 8, %s25
        %p403 = scmp.eq.s32.totalorder %s25, 0
        // Predicated region
        $region91: #{tpu_custom_call.1} parent=81 // pred_check
          %p404 = pneg %p403
        $region92: #{tpu_custom_call.1} parent=81 // pred_check_branch
          %406 = sbr.rel (%p404) target = $region94
        $region93: #{tpu_custom_call.1} parent=81 // pred_region
          %vm407 = vcmask 25600
          %408 = vst.msk [vmem:[#allocation2] sm:$0x3] %vm407, 0.0
        $region94: #{tpu_custom_call.1} parent=81 // pred_fallthru
          _
        %v409 = vld [vmem:[#allocation2] sm:$0x3]
        %v410 = vld [vmem:[%s371] sm:$0xff]
        %v411 = vld [vmem:[%s371 + $0x8] sm:$0xff]
        %v412 = vld [vmem:[%s371 + $0x10] sm:$0xff]
        %v413 = vld [vmem:[%s371 + $0x18] sm:$0xff]
        %v414 = vld [vmem:[%s371 + $0x20] sm:$0xff]
        %v415 = vld [vmem:[%s371 + $0x28] sm:$0xff]
        %v416 = vld [vmem:[%s371 + $0x30] sm:$0xff]
        %v417 = vld [vmem:[%s371 + $0x38] sm:$0xff]
        %v418 = vld [vmem:[%s371 + $0x40] sm:$0xff]
        %v419 = vld [vmem:[%s371 + $0x48] sm:$0xff]
        %v420 = vld [vmem:[%s371 + $0x50] sm:$0xff]
        %v421 = vld [vmem:[%s371 + $0x58] sm:$0xff]
        %v422 = vld [vmem:[%s371 + $0x60] sm:$0xff]
        %v423 = vld [vmem:[%s371 + $0x68] sm:$0xff]
        %v424 = vld [vmem:[%s371 + $0x70] sm:$0xff]
        %v425 = vld [vmem:[%s371 + $0x78] sm:$0xff]
        %vm426 = vcmask 31744
        %v427 = vsel %vm426, %v410, 0.0
        %v428 = vsel %vm426, %v411, 0.0
        %v429 = vadd.f32 %v427, %v428
        %v430 = vsel %vm426, %v412, 0.0
        %v431 = vadd.f32 %v429, %v430
        %v432 = vsel %vm426, %v413, 0.0
        %v433 = vadd.f32 %v431, %v432
        %v434 = vsel %vm426, %v414, 0.0
        %v435 = vadd.f32 %v433, %v434
        %v436 = vsel %vm426, %v415, 0.0
        %v437 = vadd.f32 %v435, %v436
        %v438 = vsel %vm426, %v416, 0.0
        %v439 = vadd.f32 %v437, %v438
        %v440 = vsel %vm426, %v417, 0.0
        %v441 = vadd.f32 %v439, %v440
        %v442 = vrot.slane %v441, 4
        %v443 = vadd.f32 %v441, %v442
        %v444 = vrot.slane %v443, 2
        %v445 = vadd.f32 %v443, %v444
        %v446 = vrot.slane %v445, 1
        %v447 = vadd.f32 %v445, %v446
        %v448 = vsel %vm426, %v418, 0.0
        %v449 = vsel %vm426, %v419, 0.0
        %v450 = vadd.f32 %v448, %v449
        %v451 = vsel %vm426, %v420, 0.0
        %v452 = vadd.f32 %v450, %v451
        %v453 = vsel %vm426, %v421, 0.0
        %v454 = vadd.f32 %v452, %v453
        %v455 = vsel %vm426, %v422, 0.0
        %v456 = vadd.f32 %v454, %v455
        %v457 = vsel %vm426, %v423, 0.0
        %v458 = vadd.f32 %v456, %v457
        %v459 = vsel %vm426, %v424, 0.0
        %v460 = vadd.f32 %v458, %v459
        %v461 = vsel %vm426, %v425, 0.0
        %v462 = vadd.f32 %v460, %v461
        %v463 = vrot.slane %v462, 4
        %v464 = vadd.f32 %v462, %v463
        %v465 = vrot.slane %v464, 2
        %v466 = vadd.f32 %v464, %v465
        %v467 = vrot.slane %v466, 1
        %v468 = vadd.f32 %v466, %v467
        %vm471 = vcmask 1041409
        %v472 = vsel %vm471, %v468, %v447
        %v474 = vadd.f32 %v409, %v472
        %vm475 = vcmask 25600
        %476 = vst.msk [vmem:[#allocation2] sm:$0x3] %vm475, %v474
        %p477 = scmp.eq.s32.totalorder %s25, 3
        // Predicated region
        $region95: #{tpu_custom_call.1} parent=81 // pred_check
          %p478 = pneg %p477
        $region96: #{tpu_custom_call.1} parent=81 // pred_check_branch
          %480 = sbr.rel (%p478) target = $region98
        $region97: #{tpu_custom_call.1} parent=81 // pred_region
          %v481 = vld [vmem:[#allocation2] sm:$0x3]
          %v482 = vmul.f32 %v481, 0.00390625
          %v483 = vpack.c.bf16 %v482, %v482
          %v484 = vld [vmem:[%s1] sm:$0xff]
          %v485 = vld [vmem:[%s1 + $0x8] sm:$0xff]
          %v486 = vld [vmem:[%s2] sm:$0xff]
          %v488 = vperm.slane %v486, 0
          %v489 = vperm.slane %v486, 1
          %v490 = vperm.slane %v486, 2
          %v491 = vperm.slane %v486, 3
          %v492 = vperm.slane %v486, 4
          %v493 = vperm.slane %v486, 5
          %v494 = vperm.slane %v486, 6
          %v495 = vperm.slane %v486, 7
          %505 = vst [vmem:[#allocation1] ss:$4 sm:$0xff] %v484
          %s507 = scalar_lea.vmem [#allocation1], 32
          %508 = vst [vmem:[%s507] ss:$4 sm:$0xff] %v485
          %v509 = vld.sshfl [vmem:[#allocation1] sm:$0xff pattern:$0x73625140]
          %v510 = vld.sshfl [vmem:[#allocation1 + $0x8] sm:$0xff pattern:$0x73625140]
          %v511 = vld.sshfl [vmem:[#allocation1 + $0x10] sm:$0xff pattern:$0x73625140]
          %v512 = vld.sshfl [vmem:[#allocation1 + $0x18] sm:$0xff pattern:$0x73625140]
          %v513 = vld.sshfl [vmem:[#allocation1 + $0x20] sm:$0xff pattern:$0x73625140]
          %v514 = vld.sshfl [vmem:[#allocation1 + $0x28] sm:$0xff pattern:$0x73625140]
          %v515 = vld.sshfl [vmem:[#allocation1 + $0x30] sm:$0xff pattern:$0x73625140]
          %v516 = vld.sshfl [vmem:[#allocation1 + $0x38] sm:$0xff pattern:$0x73625140]
          %v518 = vsel %vm426, %v483, 0
          %vm520 = vcmask 1041408
          %v521 = vsel %vm520, %v509, 0
          %v523 = vsel %vm520, %v510, 0
          %v525 = vsel %vm520, %v511, 0
          %v527 = vsel %vm520, %v512, 0
          %v529 = vsel %vm520, %v513, 0
          %v531 = vsel %vm520, %v514, 0
          %v533 = vsel %vm520, %v515, 0
          %v535 = vsel %vm520, %v516, 0
          %537 = vmatpush.bf16.msra.mxu0 0
          %538 = vmatpush.bf16.msra.mxu0 0
          %539 = vmatpush.bf16.msra.mxu0 0
          %540 = vmatpush.bf16.msra.mxu0 0
          %541 = vmatpush.bf16.msra.mxu0 0
          %542 = vmatpush.bf16.msra.mxu0 0
          %543 = vmatpush.bf16.msra.mxu0 0
          %544 = vmatpush.bf16.msra.mxu0 %v521
          %545 = vmatmul.bf16.gmra.mxu0 %v518
          %v546 = vpop.f32.mrf.mxu0
          %v547 = vadd.f32 %v488, %v546
          %v548 = vpop.f32.mrf.mxu0
          %549 = vdwg.mxu0
          %550 = vmatpush.bf16.msra.mxu0 0
          %551 = vmatpush.bf16.msra.mxu0 0
          %552 = vmatpush.bf16.msra.mxu0 0
          %553 = vmatpush.bf16.msra.mxu0 0
          %554 = vmatpush.bf16.msra.mxu0 0
          %555 = vmatpush.bf16.msra.mxu0 0
          %556 = vmatpush.bf16.msra.mxu0 0
          %557 = vmatpush.bf16.msra.mxu0 %v523
          %558 = vmatmul.bf16.gmra.mxu0 %v518
          %v559 = vpop.f32.mrf.mxu0
          %v560 = vadd.f32 %v489, %v559
          %v561 = vpop.f32.mrf.mxu0
          %562 = vdwg.mxu0
          %563 = vmatpush.bf16.msra.mxu0 0
          %564 = vmatpush.bf16.msra.mxu0 0
          %565 = vmatpush.bf16.msra.mxu0 0
          %566 = vmatpush.bf16.msra.mxu0 0
          %567 = vmatpush.bf16.msra.mxu0 0
          %568 = vmatpush.bf16.msra.mxu0 0
          %569 = vmatpush.bf16.msra.mxu0 0
          %570 = vmatpush.bf16.msra.mxu0 %v525
          %571 = vmatmul.bf16.gmra.mxu0 %v518
          %v572 = vpop.f32.mrf.mxu0
          %v573 = vadd.f32 %v490, %v572
          %v574 = vpop.f32.mrf.mxu0
          %575 = vdwg.mxu0
          %576 = vmatpush.bf16.msra.mxu0 0
          %577 = vmatpush.bf16.msra.mxu0 0
          %578 = vmatpush.bf16.msra.mxu0 0
          %579 = vmatpush.bf16.msra.mxu0 0
          %580 = vmatpush.bf16.msra.mxu0 0
          %581 = vmatpush.bf16.msra.mxu0 0
          %582 = vmatpush.bf16.msra.mxu0 0
          %583 = vmatpush.bf16.msra.mxu0 %v527
          %584 = vmatmul.bf16.gmra.mxu0 %v518
          %v585 = vpop.f32.mrf.mxu0
          %v586 = vadd.f32 %v491, %v585
          %v587 = vpop.f32.mrf.mxu0
          %588 = vdwg.mxu0
          %589 = vmatpush.bf16.msra.mxu0 0
          %590 = vmatpush.bf16.msra.mxu0 0
          %591 = vmatpush.bf16.msra.mxu0 0
          %592 = vmatpush.bf16.msra.mxu0 0
          %593 = vmatpush.bf16.msra.mxu0 0
          %594 = vmatpush.bf16.msra.mxu0 0
          %595 = vmatpush.bf16.msra.mxu0 0
          %596 = vmatpush.bf16.msra.mxu0 %v529
          %597 = vmatmul.bf16.gmra.mxu0 %v518
          %v598 = vpop.f32.mrf.mxu0
          %v599 = vadd.f32 %v492, %v598
          %v600 = vpop.f32.mrf.mxu0
          %601 = vdwg.mxu0
          %602 = vmatpush.bf16.msra.mxu0 0
          %603 = vmatpush.bf16.msra.mxu0 0
          %604 = vmatpush.bf16.msra.mxu0 0
          %605 = vmatpush.bf16.msra.mxu0 0
          %606 = vmatpush.bf16.msra.mxu0 0
          %607 = vmatpush.bf16.msra.mxu0 0
          %608 = vmatpush.bf16.msra.mxu0 0
          %609 = vmatpush.bf16.msra.mxu0 %v531
          %610 = vmatmul.bf16.gmra.mxu0 %v518
          %v611 = vpop.f32.mrf.mxu0
          %v612 = vadd.f32 %v493, %v611
          %v613 = vpop.f32.mrf.mxu0
          %614 = vdwg.mxu0
          %615 = vmatpush.bf16.msra.mxu0 0
          %616 = vmatpush.bf16.msra.mxu0 0
          %617 = vmatpush.bf16.msra.mxu0 0
          %618 = vmatpush.bf16.msra.mxu0 0
          %619 = vmatpush.bf16.msra.mxu0 0
          %620 = vmatpush.bf16.msra.mxu0 0
          %621 = vmatpush.bf16.msra.mxu0 0
          %622 = vmatpush.bf16.msra.mxu0 %v533
          %623 = vmatmul.bf16.gmra.mxu0 %v518
          %v624 = vpop.f32.mrf.mxu0
          %v625 = vadd.f32 %v494, %v624
          %v626 = vpop.f32.mrf.mxu0
          %627 = vdwg.mxu0
          %628 = vmatpush.bf16.msra.mxu0 0
          %629 = vmatpush.bf16.msra.mxu0 0
          %630 = vmatpush.bf16.msra.mxu0 0
          %631 = vmatpush.bf16.msra.mxu0 0
          %632 = vmatpush.bf16.msra.mxu0 0
          %633 = vmatpush.bf16.msra.mxu0 0
          %634 = vmatpush.bf16.msra.mxu0 0
          %635 = vmatpush.bf16.msra.mxu0 %v535
          %636 = vmatmul.bf16.gmra.mxu0 %v518
          %v637 = vpop.f32.mrf.mxu0
          %v638 = vadd.f32 %v495, %v637
          %v639 = vpop.f32.mrf.mxu0
          %640 = vdwg.mxu0
          %v641 = vmax.f32 %v547, 0.0
          %v642 = vmax.f32 %v560, 0.0
          %v643 = vmax.f32 %v573, 0.0
          %v644 = vmax.f32 %v586, 0.0
          %v645 = vmax.f32 %v599, 0.0
          %v646 = vmax.f32 %v612, 0.0
          %v647 = vmax.f32 %v625, 0.0
          %v648 = vmax.f32 %v638, 0.0
          %v649 = vpack.c.bf16 %v641, %v641
          %v650 = vpack.c.bf16 %v642, %v642
          %v651 = vpack.c.bf16 %v643, %v643
          %v652 = vpack.c.bf16 %v644, %v644
          %v653 = vpack.c.bf16 %v645, %v645
          %v654 = vpack.c.bf16 %v646, %v646
          %v655 = vpack.c.bf16 %v647, %v647
          %v656 = vpack.c.bf16 %v648, %v648
          %v657 = vld [vmem:[#allocation4] sm:$0xff]
          %v658 = vld [vmem:[#allocation4 + $0x8] sm:$0xff]
          %v659 = vld [vmem:[#allocation4 + $0x10] sm:$0xff]
          %v660 = vld [vmem:[#allocation4 + $0x18] sm:$0xff]
          %v661 = vld [vmem:[#allocation4 + $0x20] sm:$0xff]
          %v662 = vld [vmem:[#allocation4 + $0x28] sm:$0xff]
          %v663 = vld [vmem:[#allocation4 + $0x30] sm:$0xff]
          %v664 = vld [vmem:[#allocation4 + $0x38] sm:$0xff]
          %v665 = vld [vmem:[#allocation4 + $0x40] sm:$0xff]
          %v666 = vld [vmem:[#allocation4 + $0x48] sm:$0xff]
          %v667 = vld [vmem:[#allocation4 + $0x50] sm:$0xff]
          %v668 = vld [vmem:[#allocation4 + $0x58] sm:$0xff]
          %v669 = vld [vmem:[#allocation4 + $0x60] sm:$0xff]
          %v670 = vld [vmem:[#allocation4 + $0x68] sm:$0xff]
          %v671 = vld [vmem:[#allocation4 + $0x70] sm:$0xff]
          %v672 = vld [vmem:[#allocation4 + $0x78] sm:$0xff]
          %v673 = vld [vmem:[#allocation4 + $0x80] sm:$0xff]
          %v674 = vld [vmem:[#allocation4 + $0x88] sm:$0xff]
          %v675 = vld [vmem:[#allocation4 + $0x90] sm:$0xff]
          %v676 = vld [vmem:[#allocation4 + $0x98] sm:$0xff]
          %v677 = vld [vmem:[#allocation4 + $0xa0] sm:$0xff]
          %v678 = vld [vmem:[#allocation4 + $0xa8] sm:$0xff]
          %v679 = vld [vmem:[#allocation4 + $0xb0] sm:$0xff]
          %v680 = vld [vmem:[#allocation4 + $0xb8] sm:$0xff]
          %v681 = vld [vmem:[#allocation4 + $0xc0] sm:$0xff]
          %v682 = vld [vmem:[#allocation4 + $0xc8] sm:$0xff]
          %v683 = vld [vmem:[#allocation4 + $0xd0] sm:$0xff]
          %v684 = vld [vmem:[#allocation4 + $0xd8] sm:$0xff]
          %v685 = vld [vmem:[#allocation4 + $0xe0] sm:$0xff]
          %v686 = vld [vmem:[#allocation4 + $0xe8] sm:$0xff]
          %v687 = vld [vmem:[#allocation4 + $0xf0] sm:$0xff]
          %v688 = vld [vmem:[#allocation4 + $0xf8] sm:$0xff]
          %v689 = vld [vmem:[#allocation4 + $0x100] sm:$0xff]
          %v690 = vld [vmem:[#allocation4 + $0x108] sm:$0xff]
          %v691 = vld [vmem:[#allocation4 + $0x110] sm:$0xff]
          %v692 = vld [vmem:[#allocation4 + $0x118] sm:$0xff]
          %v693 = vld [vmem:[#allocation4 + $0x120] sm:$0xff]
          %v694 = vld [vmem:[#allocation4 + $0x128] sm:$0xff]
          %v695 = vld [vmem:[#allocation4 + $0x130] sm:$0xff]
          %v696 = vld [vmem:[#allocation4 + $0x138] sm:$0xff]
          %v697 = vld [vmem:[#allocation4 + $0x140] sm:$0xff]
          %v698 = vld [vmem:[#allocation4 + $0x148] sm:$0xff]
          %v699 = vld [vmem:[#allocation4 + $0x150] sm:$0xff]
          %v700 = vld [vmem:[#allocation4 + $0x158] sm:$0xff]
          %v701 = vld [vmem:[#allocation4 + $0x160] sm:$0xff]
          %v702 = vld [vmem:[#allocation4 + $0x168] sm:$0xff]
          %v703 = vld [vmem:[#allocation4 + $0x170] sm:$0xff]
          %v704 = vld [vmem:[#allocation4 + $0x178] sm:$0xff]
          %v705 = vld [vmem:[#allocation4 + $0x180] sm:$0xff]
          %v706 = vld [vmem:[#allocation4 + $0x188] sm:$0xff]
          %v707 = vld [vmem:[#allocation4 + $0x190] sm:$0xff]
          %v708 = vld [vmem:[#allocation4 + $0x198] sm:$0xff]
          %v709 = vld [vmem:[#allocation4 + $0x1a0] sm:$0xff]
          %v710 = vld [vmem:[#allocation4 + $0x1a8] sm:$0xff]
          %v711 = vld [vmem:[#allocation4 + $0x1b0] sm:$0xff]
          %v712 = vld [vmem:[#allocation4 + $0x1b8] sm:$0xff]
          %v713 = vld [vmem:[#allocation4 + $0x1c0] sm:$0xff]
          %v714 = vld [vmem:[#allocation4 + $0x1c8] sm:$0xff]
          %v715 = vld [vmem:[#allocation4 + $0x1d0] sm:$0xff]
          %v716 = vld [vmem:[#allocation4 + $0x1d8] sm:$0xff]
          %v717 = vld [vmem:[#allocation4 + $0x1e0] sm:$0xff]
          %v718 = vld [vmem:[#allocation4 + $0x1e8] sm:$0xff]
          %v719 = vld [vmem:[#allocation4 + $0x1f0] sm:$0xff]
          %v720 = vld [vmem:[#allocation4 + $0x1f8] sm:$0xff]
          %v721 = vld [vmem:[#allocation4 + $0x200] sm:$0xff]
          %v722 = vld [vmem:[#allocation4 + $0x208] sm:$0xff]
          %v723 = vld [vmem:[#allocation4 + $0x210] sm:$0xff]
          %v724 = vld [vmem:[#allocation4 + $0x218] sm:$0xff]
          %v725 = vld [vmem:[#allocation4 + $0x220] sm:$0xff]
          %v726 = vld [vmem:[#allocation4 + $0x228] sm:$0xff]
          %v727 = vld [vmem:[#allocation4 + $0x230] sm:$0xff]
          %v728 = vld [vmem:[#allocation4 + $0x238] sm:$0xff]
          %v729 = vld [vmem:[#allocation4 + $0x240] sm:$0xff]
          %v730 = vld [vmem:[#allocation4 + $0x248] sm:$0xff]
          %v731 = vld [vmem:[#allocation4 + $0x250] sm:$0xff]
          %v732 = vld [vmem:[#allocation4 + $0x258] sm:$0xff]
          %v733 = vld [vmem:[#allocation4 + $0x260] sm:$0xff]
          %v734 = vld [vmem:[#allocation4 + $0x268] sm:$0xff]
          %v735 = vld [vmem:[#allocation4 + $0x270] sm:$0xff]
          %v736 = vld [vmem:[#allocation4 + $0x278] sm:$0xff]
          %v737 = vld [vmem:[#allocation4 + $0x280] sm:$0xff]
          %v738 = vld [vmem:[#allocation4 + $0x288] sm:$0xff]
          %v739 = vld [vmem:[#allocation4 + $0x290] sm:$0xff]
          %v740 = vld [vmem:[#allocation4 + $0x298] sm:$0xff]
          %v741 = vld [vmem:[#allocation4 + $0x2a0] sm:$0xff]
          %v742 = vld [vmem:[#allocation4 + $0x2a8] sm:$0xff]
          %v743 = vld [vmem:[#allocation4 + $0x2b0] sm:$0xff]
          %v744 = vld [vmem:[#allocation4 + $0x2b8] sm:$0xff]
          %v745 = vld [vmem:[#allocation4 + $0x2c0] sm:$0xff]
          %v746 = vld [vmem:[#allocation4 + $0x2c8] sm:$0xff]
          %v747 = vld [vmem:[#allocation4 + $0x2d0] sm:$0xff]
          %v748 = vld [vmem:[#allocation4 + $0x2d8] sm:$0xff]
          %v749 = vld [vmem:[#allocation4 + $0x2e0] sm:$0xff]
          %v750 = vld [vmem:[#allocation4 + $0x2e8] sm:$0xff]
          %v751 = vld [vmem:[#allocation4 + $0x2f0] sm:$0xff]
          %v752 = vld [vmem:[#allocation4 + $0x2f8] sm:$0xff]
          %v753 = vld [vmem:[#allocation4 + $0x300] sm:$0xff]
          %v754 = vld [vmem:[#allocation4 + $0x308] sm:$0xff]
          %v755 = vld [vmem:[#allocation4 + $0x310] sm:$0xff]
          %v756 = vld [vmem:[#allocation4 + $0x318] sm:$0xff]
          %v757 = vld [vmem:[#allocation4 + $0x320] sm:$0xff]
          %v758 = vld [vmem:[#allocation4 + $0x328] sm:$0xff]
          %v759 = vld [vmem:[#allocation4 + $0x330] sm:$0xff]
          %v760 = vld [vmem:[#allocation4 + $0x338] sm:$0xff]
          %v761 = vld [vmem:[#allocation4 + $0x340] sm:$0xff]
          %v762 = vld [vmem:[#allocation4 + $0x348] sm:$0xff]
          %v763 = vld [vmem:[#allocation4 + $0x350] sm:$0xff]
          %v764 = vld [vmem:[#allocation4 + $0x358] sm:$0xff]
          %v765 = vld [vmem:[#allocation4 + $0x360] sm:$0xff]
          %v766 = vld [vmem:[#allocation4 + $0x368] sm:$0xff]
          %v767 = vld [vmem:[#allocation4 + $0x370] sm:$0xff]
          %v768 = vld [vmem:[#allocation4 + $0x378] sm:$0xff]
          %v769 = vld [vmem:[#allocation4 + $0x380] sm:$0xff]
          %v770 = vld [vmem:[#allocation4 + $0x388] sm:$0xff]
          %v771 = vld [vmem:[#allocation4 + $0x390] sm:$0xff]
          %v772 = vld [vmem:[#allocation4 + $0x398] sm:$0xff]
          %v773 = vld [vmem:[#allocation4 + $0x3a0] sm:$0xff]
          %v774 = vld [vmem:[#allocation4 + $0x3a8] sm:$0xff]
          %v775 = vld [vmem:[#allocation4 + $0x3b0] sm:$0xff]
          %v776 = vld [vmem:[#allocation4 + $0x3b8] sm:$0xff]
          %v777 = vld [vmem:[#allocation4 + $0x3c0] sm:$0xff]
          %v778 = vld [vmem:[#allocation4 + $0x3c8] sm:$0xff]
          %v779 = vld [vmem:[#allocation4 + $0x3d0] sm:$0xff]
          %v780 = vld [vmem:[#allocation4 + $0x3d8] sm:$0xff]
          %v781 = vld [vmem:[#allocation4 + $0x3e0] sm:$0xff]
          %v782 = vld [vmem:[#allocation4 + $0x3e8] sm:$0xff]
          %v783 = vld [vmem:[#allocation4 + $0x3f0] sm:$0xff]
          %v784 = vld [vmem:[#allocation4 + $0x3f8] sm:$0xff]
          %v785 = vld [vmem:[#allocation4 + $0x400] sm:$0xff]
          %v786 = vld [vmem:[#allocation4 + $0x408] sm:$0xff]
          %v787 = vld [vmem:[#allocation4 + $0x410] sm:$0xff]
          %v788 = vld [vmem:[#allocation4 + $0x418] sm:$0xff]
          %v789 = vld [vmem:[#allocation4 + $0x420] sm:$0xff]
          %v790 = vld [vmem:[#allocation4 + $0x428] sm:$0xff]
          %v791 = vld [vmem:[#allocation4 + $0x430] sm:$0xff]
          %v792 = vld [vmem:[#allocation4 + $0x438] sm:$0xff]
          %v793 = vld [vmem:[#allocation4 + $0x440] sm:$0xff]
          %v794 = vld [vmem:[#allocation4 + $0x448] sm:$0xff]
          %v795 = vld [vmem:[#allocation4 + $0x450] sm:$0xff]
          %v796 = vld [vmem:[#allocation4 + $0x458] sm:$0xff]
          %v797 = vld [vmem:[#allocation4 + $0x460] sm:$0xff]
          %v798 = vld [vmem:[#allocation4 + $0x468] sm:$0xff]
          %v799 = vld [vmem:[#allocation4 + $0x470] sm:$0xff]
          %v800 = vld [vmem:[#allocation4 + $0x478] sm:$0xff]
          %v801 = vld [vmem:[#allocation4 + $0x480] sm:$0xff]
          %v802 = vld [vmem:[#allocation4 + $0x488] sm:$0xff]
          %v803 = vld [vmem:[#allocation4 + $0x490] sm:$0xff]
          %v804 = vld [vmem:[#allocation4 + $0x498] sm:$0xff]
          %v805 = vld [vmem:[#allocation4 + $0x4a0] sm:$0xff]
          %v806 = vld [vmem:[#allocation4 + $0x4a8] sm:$0xff]
          %v807 = vld [vmem:[#allocation4 + $0x4b0] sm:$0xff]
          %v808 = vld [vmem:[#allocation4 + $0x4b8] sm:$0xff]
          %v809 = vld [vmem:[#allocation4 + $0x4c0] sm:$0xff]
          %v810 = vld [vmem:[#allocation4 + $0x4c8] sm:$0xff]
          %v811 = vld [vmem:[#allocation4 + $0x4d0] sm:$0xff]
          %v812 = vld [vmem:[#allocation4 + $0x4d8] sm:$0xff]
          %v813 = vld [vmem:[#allocation4 + $0x4e0] sm:$0xff]
          %v814 = vld [vmem:[#allocation4 + $0x4e8] sm:$0xff]
          %v815 = vld [vmem:[#allocation4 + $0x4f0] sm:$0xff]
          %v816 = vld [vmem:[#allocation4 + $0x4f8] sm:$0xff]
          %v817 = vld [vmem:[#allocation4 + $0x500] sm:$0xff]
          %v818 = vld [vmem:[#allocation4 + $0x508] sm:$0xff]
          %v819 = vld [vmem:[#allocation4 + $0x510] sm:$0xff]
          %v820 = vld [vmem:[#allocation4 + $0x518] sm:$0xff]
          %v821 = vld [vmem:[#allocation4 + $0x520] sm:$0xff]
          %v822 = vld [vmem:[#allocation4 + $0x528] sm:$0xff]
          %v823 = vld [vmem:[#allocation4 + $0x530] sm:$0xff]
          %v824 = vld [vmem:[#allocation4 + $0x538] sm:$0xff]
          %v825 = vld [vmem:[#allocation4 + $0x540] sm:$0xff]
          %v826 = vld [vmem:[#allocation4 + $0x548] sm:$0xff]
          %v827 = vld [vmem:[#allocation4 + $0x550] sm:$0xff]
          %v828 = vld [vmem:[#allocation4 + $0x558] sm:$0xff]
          %v829 = vld [vmem:[#allocation4 + $0x560] sm:$0xff]
          %v830 = vld [vmem:[#allocation4 + $0x568] sm:$0xff]
          %v831 = vld [vmem:[#allocation4 + $0x570] sm:$0xff]
          %v832 = vld [vmem:[#allocation4 + $0x578] sm:$0xff]
          %v833 = vld [vmem:[#allocation4 + $0x580] sm:$0xff]
          %v834 = vld [vmem:[#allocation4 + $0x588] sm:$0xff]
          %v835 = vld [vmem:[#allocation4 + $0x590] sm:$0xff]
          %v836 = vld [vmem:[#allocation4 + $0x598] sm:$0xff]
          %v837 = vld [vmem:[#allocation4 + $0x5a0] sm:$0xff]
          %v838 = vld [vmem:[#allocation4 + $0x5a8] sm:$0xff]
          %v839 = vld [vmem:[#allocation4 + $0x5b0] sm:$0xff]
          %v840 = vld [vmem:[#allocation4 + $0x5b8] sm:$0xff]
          %v841 = vld [vmem:[#allocation4 + $0x5c0] sm:$0xff]
          %v842 = vld [vmem:[#allocation4 + $0x5c8] sm:$0xff]
          %v843 = vld [vmem:[#allocation4 + $0x5d0] sm:$0xff]
          %v844 = vld [vmem:[#allocation4 + $0x5d8] sm:$0xff]
          %v845 = vld [vmem:[#allocation4 + $0x5e0] sm:$0xff]
          %v846 = vld [vmem:[#allocation4 + $0x5e8] sm:$0xff]
          %v847 = vld [vmem:[#allocation4 + $0x5f0] sm:$0xff]
          %v848 = vld [vmem:[#allocation4 + $0x5f8] sm:$0xff]
          %v849 = vld [vmem:[#allocation4 + $0x600] sm:$0xff]
          %v850 = vld [vmem:[#allocation4 + $0x608] sm:$0xff]
          %v851 = vld [vmem:[#allocation4 + $0x610] sm:$0xff]
          %v852 = vld [vmem:[#allocation4 + $0x618] sm:$0xff]
          %v853 = vld [vmem:[#allocation4 + $0x620] sm:$0xff]
          %v854 = vld [vmem:[#allocation4 + $0x628] sm:$0xff]
          %v855 = vld [vmem:[#allocation4 + $0x630] sm:$0xff]
          %v856 = vld [vmem:[#allocation4 + $0x638] sm:$0xff]
          %v857 = vld [vmem:[#allocation4 + $0x640] sm:$0xff]
          %v858 = vld [vmem:[#allocation4 + $0x648] sm:$0xff]
          %v859 = vld [vmem:[#allocation4 + $0x650] sm:$0xff]
          %v860 = vld [vmem:[#allocation4 + $0x658] sm:$0xff]
          %v861 = vld [vmem:[#allocation4 + $0x660] sm:$0xff]
          %v862 = vld [vmem:[#allocation4 + $0x668] sm:$0xff]
          %v863 = vld [vmem:[#allocation4 + $0x670] sm:$0xff]
          %v864 = vld [vmem:[#allocation4 + $0x678] sm:$0xff]
          %v865 = vld [vmem:[#allocation4 + $0x680] sm:$0xff]
          %v866 = vld [vmem:[#allocation4 + $0x688] sm:$0xff]
          %v867 = vld [vmem:[#allocation4 + $0x690] sm:$0xff]
          %v868 = vld [vmem:[#allocation4 + $0x698] sm:$0xff]
          %v869 = vld [vmem:[#allocation4 + $0x6a0] sm:$0xff]
          %v870 = vld [vmem:[#allocation4 + $0x6a8] sm:$0xff]
          %v871 = vld [vmem:[#allocation4 + $0x6b0] sm:$0xff]
          %v872 = vld [vmem:[#allocation4 + $0x6b8] sm:$0xff]
          %v873 = vld [vmem:[#allocation4 + $0x6c0] sm:$0xff]
          %v874 = vld [vmem:[#allocation4 + $0x6c8] sm:$0xff]
          %v875 = vld [vmem:[#allocation4 + $0x6d0] sm:$0xff]
          %v876 = vld [vmem:[#allocation4 + $0x6d8] sm:$0xff]
          %v877 = vld [vmem:[#allocation4 + $0x6e0] sm:$0xff]
          %v878 = vld [vmem:[#allocation4 + $0x6e8] sm:$0xff]
          %v879 = vld [vmem:[#allocation4 + $0x6f0] sm:$0xff]
          %v880 = vld [vmem:[#allocation4 + $0x6f8] sm:$0xff]
          %v881 = vld [vmem:[#allocation4 + $0x700] sm:$0xff]
          %v882 = vld [vmem:[#allocation4 + $0x708] sm:$0xff]
          %v883 = vld [vmem:[#allocation4 + $0x710] sm:$0xff]
          %v884 = vld [vmem:[#allocation4 + $0x718] sm:$0xff]
          %v885 = vld [vmem:[#allocation4 + $0x720] sm:$0xff]
          %v886 = vld [vmem:[#allocation4 + $0x728] sm:$0xff]
          %v887 = vld [vmem:[#allocation4 + $0x730] sm:$0xff]
          %v888 = vld [vmem:[#allocation4 + $0x738] sm:$0xff]
          %v889 = vld [vmem:[#allocation4 + $0x740] sm:$0xff]
          %v890 = vld [vmem:[#allocation4 + $0x748] sm:$0xff]
          %v891 = vld [vmem:[#allocation4 + $0x750] sm:$0xff]
          %v892 = vld [vmem:[#allocation4 + $0x758] sm:$0xff]
          %v893 = vld [vmem:[#allocation4 + $0x760] sm:$0xff]
          %v894 = vld [vmem:[#allocation4 + $0x768] sm:$0xff]
          %v895 = vld [vmem:[#allocation4 + $0x770] sm:$0xff]
          %v896 = vld [vmem:[#allocation4 + $0x778] sm:$0xff]
          %v897 = vld [vmem:[#allocation4 + $0x780] sm:$0xff]
          %v898 = vld [vmem:[#allocation4 + $0x788] sm:$0xff]
          %v899 = vld [vmem:[#allocation4 + $0x790] sm:$0xff]
          %v900 = vld [vmem:[#allocation4 + $0x798] sm:$0xff]
          %v901 = vld [vmem:[#allocation4 + $0x7a0] sm:$0xff]
          %v902 = vld [vmem:[#allocation4 + $0x7a8] sm:$0xff]
          %v903 = vld [vmem:[#allocation4 + $0x7b0] sm:$0xff]
          %v904 = vld [vmem:[#allocation4 + $0x7b8] sm:$0xff]
          %v905 = vld [vmem:[#allocation4 + $0x7c0] sm:$0xff]
          %v906 = vld [vmem:[#allocation4 + $0x7c8] sm:$0xff]
          %v907 = vld [vmem:[#allocation4 + $0x7d0] sm:$0xff]
          %v908 = vld [vmem:[#allocation4 + $0x7d8] sm:$0xff]
          %v909 = vld [vmem:[#allocation4 + $0x7e0] sm:$0xff]
          %v910 = vld [vmem:[#allocation4 + $0x7e8] sm:$0xff]
          %v911 = vld [vmem:[#allocation4 + $0x7f0] sm:$0xff]
          %v912 = vld [vmem:[#allocation4 + $0x7f8] sm:$0xff]
          %v913 = vld [vmem:[%s4] sm:$0xf]
          %v915 = vperm.slane %v913, 0
          %v916 = vperm.slane %v913, 1
          %v917 = vperm.slane %v913, 2
          %v918 = vperm.slane %v913, 3
          %v1179 = vunpack.c.l.b16 %v657
          %v1180 = vunpack.c.h.b16 %v657
          %v1181 = vunpack.c.l.b16 %v658
          %v1182 = vunpack.c.h.b16 %v658
          %v1183 = vunpack.c.l.b16 %v659
          %v1184 = vunpack.c.h.b16 %v659
          %v1185 = vunpack.c.l.b16 %v660
          %v1186 = vunpack.c.h.b16 %v660
          %v1187 = vunpack.c.l.b16 %v661
          %v1188 = vunpack.c.h.b16 %v661
          %v1189 = vunpack.c.l.b16 %v662
          %v1190 = vunpack.c.h.b16 %v662
          %v1191 = vunpack.c.l.b16 %v663
          %v1192 = vunpack.c.h.b16 %v663
          %v1193 = vunpack.c.l.b16 %v664
          %v1194 = vunpack.c.h.b16 %v664
          %v1195 = vunpack.c.l.b16 %v665
          %v1196 = vunpack.c.h.b16 %v665
          %v1197 = vunpack.c.l.b16 %v666
          %v1198 = vunpack.c.h.b16 %v666
          %v1199 = vunpack.c.l.b16 %v667
          %v1200 = vunpack.c.h.b16 %v667
          %v1201 = vunpack.c.l.b16 %v668
          %v1202 = vunpack.c.h.b16 %v668
          %v1203 = vunpack.c.l.b16 %v669
          %v1204 = vunpack.c.h.b16 %v669
          %v1205 = vunpack.c.l.b16 %v670
          %v1206 = vunpack.c.h.b16 %v670
          %v1207 = vunpack.c.l.b16 %v671
          %v1208 = vunpack.c.h.b16 %v671
          %v1209 = vunpack.c.l.b16 %v672
          %v1210 = vunpack.c.h.b16 %v672
          %v1211 = vunpack.c.l.b16 %v673
          %v1212 = vunpack.c.h.b16 %v673
          %v1213 = vunpack.c.l.b16 %v674
          %v1214 = vunpack.c.h.b16 %v674
          %v1215 = vunpack.c.l.b16 %v675
          %v1216 = vunpack.c.h.b16 %v675
          %v1217 = vunpack.c.l.b16 %v676
          %v1218 = vunpack.c.h.b16 %v676
          %v1219 = vunpack.c.l.b16 %v677
          %v1220 = vunpack.c.h.b16 %v677
          %v1221 = vunpack.c.l.b16 %v678
          %v1222 = vunpack.c.h.b16 %v678
          %v1223 = vunpack.c.l.b16 %v679
          %v1224 = vunpack.c.h.b16 %v679
          %v1225 = vunpack.c.l.b16 %v680
          %v1226 = vunpack.c.h.b16 %v680
          %v1227 = vunpack.c.l.b16 %v681
          %v1228 = vunpack.c.h.b16 %v681
          %v1229 = vunpack.c.l.b16 %v682
          %v1230 = vunpack.c.h.b16 %v682
          %v1231 = vunpack.c.l.b16 %v683
          %v1232 = vunpack.c.h.b16 %v683
          %v1233 = vunpack.c.l.b16 %v684
          %v1234 = vunpack.c.h.b16 %v684
          %v1235 = vunpack.c.l.b16 %v685
          %v1236 = vunpack.c.h.b16 %v685
          %v1237 = vunpack.c.l.b16 %v686
          %v1238 = vunpack.c.h.b16 %v686
          %v1239 = vunpack.c.l.b16 %v687
          %v1240 = vunpack.c.h.b16 %v687
          %v1241 = vunpack.c.l.b16 %v688
          %v1242 = vunpack.c.h.b16 %v688
          %v1243 = vunpack.c.l.b16 %v689
          %v1244 = vunpack.c.h.b16 %v689
          %v1245 = vunpack.c.l.b16 %v690
          %v1246 = vunpack.c.h.b16 %v690
          %v1247 = vunpack.c.l.b16 %v691
          %v1248 = vunpack.c.h.b16 %v691
          %v1249 = vunpack.c.l.b16 %v692
          %v1250 = vunpack.c.h.b16 %v692
          %v1251 = vunpack.c.l.b16 %v693
          %v1252 = vunpack.c.h.b16 %v693
          %v1253 = vunpack.c.l.b16 %v694
          %v1254 = vunpack.c.h.b16 %v694
          %v1255 = vunpack.c.l.b16 %v695
          %v1256 = vunpack.c.h.b16 %v695
          %v1257 = vunpack.c.l.b16 %v696
          %v1258 = vunpack.c.h.b16 %v696
          %v1259 = vunpack.c.l.b16 %v697
          %v1260 = vunpack.c.h.b16 %v697
          %v1261 = vunpack.c.l.b16 %v698
          %v1262 = vunpack.c.h.b16 %v698
          %v1263 = vunpack.c.l.b16 %v699
          %v1264 = vunpack.c.h.b16 %v699
          %v1265 = vunpack.c.l.b16 %v700
          %v1266 = vunpack.c.h.b16 %v700
          %v1267 = vunpack.c.l.b16 %v701
          %v1268 = vunpack.c.h.b16 %v701
          %v1269 = vunpack.c.l.b16 %v702
          %v1270 = vunpack.c.h.b16 %v702
          %v1271 = vunpack.c.l.b16 %v703
          %v1272 = vunpack.c.h.b16 %v703
          %v1273 = vunpack.c.l.b16 %v704
          %v1274 = vunpack.c.h.b16 %v704
          %v1275 = vunpack.c.l.b16 %v705
          %v1276 = vunpack.c.h.b16 %v705
          %v1277 = vunpack.c.l.b16 %v706
          %v1278 = vunpack.c.h.b16 %v706
          %v1279 = vunpack.c.l.b16 %v707
          %v1280 = vunpack.c.h.b16 %v707
          %v1281 = vunpack.c.l.b16 %v708
          %v1282 = vunpack.c.h.b16 %v708
          %v1283 = vunpack.c.l.b16 %v709
          %v1284 = vunpack.c.h.b16 %v709
          %v1285 = vunpack.c.l.b16 %v710
          %v1286 = vunpack.c.h.b16 %v710
          %v1287 = vunpack.c.l.b16 %v711
          %v1288 = vunpack.c.h.b16 %v711
          %v1289 = vunpack.c.l.b16 %v712
          %v1290 = vunpack.c.h.b16 %v712
          %v1291 = vunpack.c.l.b16 %v713
          %v1292 = vunpack.c.h.b16 %v713
          %v1293 = vunpack.c.l.b16 %v714
          %v1294 = vunpack.c.h.b16 %v714
          %v1295 = vunpack.c.l.b16 %v715
          %v1296 = vunpack.c.h.b16 %v715
          %v1297 = vunpack.c.l.b16 %v716
          %v1298 = vunpack.c.h.b16 %v716
          %v1299 = vunpack.c.l.b16 %v717
          %v1300 = vunpack.c.h.b16 %v717
          %v1301 = vunpack.c.l.b16 %v718
          %v1302 = vunpack.c.h.b16 %v718
          %v1303 = vunpack.c.l.b16 %v719
          %v1304 = vunpack.c.h.b16 %v719
          %v1305 = vunpack.c.l.b16 %v720
          %v1306 = vunpack.c.h.b16 %v720
          %v1307 = vunpack.c.l.b16 %v721
          %v1308 = vunpack.c.h.b16 %v721
          %v1309 = vunpack.c.l.b16 %v722
          %v1310 = vunpack.c.h.b16 %v722
          %v1311 = vunpack.c.l.b16 %v723
          %v1312 = vunpack.c.h.b16 %v723
          %v1313 = vunpack.c.l.b16 %v724
          %v1314 = vunpack.c.h.b16 %v724
          %v1315 = vunpack.c.l.b16 %v725
          %v1316 = vunpack.c.h.b16 %v725
          %v1317 = vunpack.c.l.b16 %v726
          %v1318 = vunpack.c.h.b16 %v726
          %v1319 = vunpack.c.l.b16 %v727
          %v1320 = vunpack.c.h.b16 %v727
          %v1321 = vunpack.c.l.b16 %v728
          %v1322 = vunpack.c.h.b16 %v728
          %v1323 = vunpack.c.l.b16 %v729
          %v1324 = vunpack.c.h.b16 %v729
          %v1325 = vunpack.c.l.b16 %v730
          %v1326 = vunpack.c.h.b16 %v730
          %v1327 = vunpack.c.l.b16 %v731
          %v1328 = vunpack.c.h.b16 %v731
          %v1329 = vunpack.c.l.b16 %v732
          %v1330 = vunpack.c.h.b16 %v732
          %v1331 = vunpack.c.l.b16 %v733
          %v1332 = vunpack.c.h.b16 %v733
          %v1333 = vunpack.c.l.b16 %v734
          %v1334 = vunpack.c.h.b16 %v734
          %v1335 = vunpack.c.l.b16 %v735
          %v1336 = vunpack.c.h.b16 %v735
          %v1337 = vunpack.c.l.b16 %v736
          %v1338 = vunpack.c.h.b16 %v736
          %v1339 = vunpack.c.l.b16 %v737
          %v1340 = vunpack.c.h.b16 %v737
          %v1341 = vunpack.c.l.b16 %v738
          %v1342 = vunpack.c.h.b16 %v738
          %v1343 = vunpack.c.l.b16 %v739
          %v1344 = vunpack.c.h.b16 %v739
          %v1345 = vunpack.c.l.b16 %v740
          %v1346 = vunpack.c.h.b16 %v740
          %v1347 = vunpack.c.l.b16 %v741
          %v1348 = vunpack.c.h.b16 %v741
          %v1349 = vunpack.c.l.b16 %v742
          %v1350 = vunpack.c.h.b16 %v742
          %v1351 = vunpack.c.l.b16 %v743
          %v1352 = vunpack.c.h.b16 %v743
          %v1353 = vunpack.c.l.b16 %v744
          %v1354 = vunpack.c.h.b16 %v744
          %v1355 = vunpack.c.l.b16 %v745
          %v1356 = vunpack.c.h.b16 %v745
          %v1357 = vunpack.c.l.b16 %v746
          %v1358 = vunpack.c.h.b16 %v746
          %v1359 = vunpack.c.l.b16 %v747
          %v1360 = vunpack.c.h.b16 %v747
          %v1361 = vunpack.c.l.b16 %v748
          %v1362 = vunpack.c.h.b16 %v748
          %v1363 = vunpack.c.l.b16 %v749
          %v1364 = vunpack.c.h.b16 %v749
          %v1365 = vunpack.c.l.b16 %v750
          %v1366 = vunpack.c.h.b16 %v750
          %v1367 = vunpack.c.l.b16 %v751
          %v1368 = vunpack.c.h.b16 %v751
          %v1369 = vunpack.c.l.b16 %v752
          %v1370 = vunpack.c.h.b16 %v752
          %v1371 = vunpack.c.l.b16 %v753
          %v1372 = vunpack.c.h.b16 %v753
          %v1373 = vunpack.c.l.b16 %v754
          %v1374 = vunpack.c.h.b16 %v754
          %v1375 = vunpack.c.l.b16 %v755
          %v1376 = vunpack.c.h.b16 %v755
          %v1377 = vunpack.c.l.b16 %v756
          %v1378 = vunpack.c.h.b16 %v756
          %v1379 = vunpack.c.l.b16 %v757
          %v1380 = vunpack.c.h.b16 %v757
          %v1381 = vunpack.c.l.b16 %v758
          %v1382 = vunpack.c.h.b16 %v758
          %v1383 = vunpack.c.l.b16 %v759
          %v1384 = vunpack.c.h.b16 %v759
          %v1385 = vunpack.c.l.b16 %v760
          %v1386 = vunpack.c.h.b16 %v760
          %v1387 = vunpack.c.l.b16 %v761
          %v1388 = vunpack.c.h.b16 %v761
          %v1389 = vunpack.c.l.b16 %v762
          %v1390 = vunpack.c.h.b16 %v762
          %v1391 = vunpack.c.l.b16 %v763
          %v1392 = vunpack.c.h.b16 %v763
          %v1393 = vunpack.c.l.b16 %v764
          %v1394 = vunpack.c.h.b16 %v764
          %v1395 = vunpack.c.l.b16 %v765
          %v1396 = vunpack.c.h.b16 %v765
          %v1397 = vunpack.c.l.b16 %v766
          %v1398 = vunpack.c.h.b16 %v766
          %v1399 = vunpack.c.l.b16 %v767
          %v1400 = vunpack.c.h.b16 %v767
          %v1401 = vunpack.c.l.b16 %v768
          %v1402 = vunpack.c.h.b16 %v768
          %v1403 = vunpack.c.l.b16 %v769
          %v1404 = vunpack.c.h.b16 %v769
          %v1405 = vunpack.c.l.b16 %v770
          %v1406 = vunpack.c.h.b16 %v770
          %v1407 = vunpack.c.l.b16 %v771
          %v1408 = vunpack.c.h.b16 %v771
          %v1409 = vunpack.c.l.b16 %v772
          %v1410 = vunpack.c.h.b16 %v772
          %v1411 = vunpack.c.l.b16 %v773
          %v1412 = vunpack.c.h.b16 %v773
          %v1413 = vunpack.c.l.b16 %v774
          %v1414 = vunpack.c.h.b16 %v774
          %v1415 = vunpack.c.l.b16 %v775
          %v1416 = vunpack.c.h.b16 %v775
          %v1417 = vunpack.c.l.b16 %v776
          %v1418 = vunpack.c.h.b16 %v776
          %v1419 = vunpack.c.l.b16 %v777
          %v1420 = vunpack.c.h.b16 %v777
          %v1421 = vunpack.c.l.b16 %v778
          %v1422 = vunpack.c.h.b16 %v778
          %v1423 = vunpack.c.l.b16 %v779
          %v1424 = vunpack.c.h.b16 %v779
          %v1425 = vunpack.c.l.b16 %v780
          %v1426 = vunpack.c.h.b16 %v780
          %v1427 = vunpack.c.l.b16 %v781
          %v1428 = vunpack.c.h.b16 %v781
          %v1429 = vunpack.c.l.b16 %v782
          %v1430 = vunpack.c.h.b16 %v782
          %v1431 = vunpack.c.l.b16 %v783
          %v1432 = vunpack.c.h.b16 %v783
          %v1433 = vunpack.c.l.b16 %v784
          %v1434 = vunpack.c.h.b16 %v784
          %v1435 = vunpack.c.l.b16 %v785
          %v1436 = vunpack.c.h.b16 %v785
          %v1437 = vunpack.c.l.b16 %v786
          %v1438 = vunpack.c.h.b16 %v786
          %v1439 = vunpack.c.l.b16 %v787
          %v1440 = vunpack.c.h.b16 %v787
          %v1441 = vunpack.c.l.b16 %v788
          %v1442 = vunpack.c.h.b16 %v788
          %v1443 = vunpack.c.l.b16 %v789
          %v1444 = vunpack.c.h.b16 %v789
          %v1445 = vunpack.c.l.b16 %v790
          %v1446 = vunpack.c.h.b16 %v790
          %v1447 = vunpack.c.l.b16 %v791
          %v1448 = vunpack.c.h.b16 %v791
          %v1449 = vunpack.c.l.b16 %v792
          %v1450 = vunpack.c.h.b16 %v792
          %v1451 = vunpack.c.l.b16 %v793
          %v1452 = vunpack.c.h.b16 %v793
          %v1453 = vunpack.c.l.b16 %v794
          %v1454 = vunpack.c.h.b16 %v794
          %v1455 = vunpack.c.l.b16 %v795
          %v1456 = vunpack.c.h.b16 %v795
          %v1457 = vunpack.c.l.b16 %v796
          %v1458 = vunpack.c.h.b16 %v796
          %v1459 = vunpack.c.l.b16 %v797
          %v1460 = vunpack.c.h.b16 %v797
          %v1461 = vunpack.c.l.b16 %v798
          %v1462 = vunpack.c.h.b16 %v798
          %v1463 = vunpack.c.l.b16 %v799
          %v1464 = vunpack.c.h.b16 %v799
          %v1465 = vunpack.c.l.b16 %v800
          %v1466 = vunpack.c.h.b16 %v800
          %v1467 = vunpack.c.l.b16 %v801
          %v1468 = vunpack.c.h.b16 %v801
          %v1469 = vunpack.c.l.b16 %v802
          %v1470 = vunpack.c.h.b16 %v802
          %v1471 = vunpack.c.l.b16 %v803
          %v1472 = vunpack.c.h.b16 %v803
          %v1473 = vunpack.c.l.b16 %v804
          %v1474 = vunpack.c.h.b16 %v804
          %v1475 = vunpack.c.l.b16 %v805
          %v1476 = vunpack.c.h.b16 %v805
          %v1477 = vunpack.c.l.b16 %v806
          %v1478 = vunpack.c.h.b16 %v806
          %v1479 = vunpack.c.l.b16 %v807
          %v1480 = vunpack.c.h.b16 %v807
          %v1481 = vunpack.c.l.b16 %v808
          %v1482 = vunpack.c.h.b16 %v808
          %v1483 = vunpack.c.l.b16 %v809
          %v1484 = vunpack.c.h.b16 %v809
          %v1485 = vunpack.c.l.b16 %v810
          %v1486 = vunpack.c.h.b16 %v810
          %v1487 = vunpack.c.l.b16 %v811
          %v1488 = vunpack.c.h.b16 %v811
          %v1489 = vunpack.c.l.b16 %v812
          %v1490 = vunpack.c.h.b16 %v812
          %v1491 = vunpack.c.l.b16 %v813
          %v1492 = vunpack.c.h.b16 %v813
          %v1493 = vunpack.c.l.b16 %v814
          %v1494 = vunpack.c.h.b16 %v814
          %v1495 = vunpack.c.l.b16 %v815
          %v1496 = vunpack.c.h.b16 %v815
          %v1497 = vunpack.c.l.b16 %v816
          %v1498 = vunpack.c.h.b16 %v816
          %v1499 = vunpack.c.l.b16 %v817
          %v1500 = vunpack.c.h.b16 %v817
          %v1501 = vunpack.c.l.b16 %v818
          %v1502 = vunpack.c.h.b16 %v818
          %v1503 = vunpack.c.l.b16 %v819
          %v1504 = vunpack.c.h.b16 %v819
          %v1505 = vunpack.c.l.b16 %v820
          %v1506 = vunpack.c.h.b16 %v820
          %v1507 = vunpack.c.l.b16 %v821
          %v1508 = vunpack.c.h.b16 %v821
          %v1509 = vunpack.c.l.b16 %v822
          %v1510 = vunpack.c.h.b16 %v822
          %v1511 = vunpack.c.l.b16 %v823
          %v1512 = vunpack.c.h.b16 %v823
          %v1513 = vunpack.c.l.b16 %v824
          %v1514 = vunpack.c.h.b16 %v824
          %v1515 = vunpack.c.l.b16 %v825
          %v1516 = vunpack.c.h.b16 %v825
          %v1517 = vunpack.c.l.b16 %v826
          %v1518 = vunpack.c.h.b16 %v826
          %v1519 = vunpack.c.l.b16 %v827
          %v1520 = vunpack.c.h.b16 %v827
          %v1521 = vunpack.c.l.b16 %v828
          %v1522 = vunpack.c.h.b16 %v828
          %v1523 = vunpack.c.l.b16 %v829
          %v1524 = vunpack.c.h.b16 %v829
          %v1525 = vunpack.c.l.b16 %v830
          %v1526 = vunpack.c.h.b16 %v830
          %v1527 = vunpack.c.l.b16 %v831
          %v1528 = vunpack.c.h.b16 %v831
          %v1529 = vunpack.c.l.b16 %v832
          %v1530 = vunpack.c.h.b16 %v832
          %v1531 = vunpack.c.l.b16 %v833
          %v1532 = vunpack.c.h.b16 %v833
          %v1533 = vunpack.c.l.b16 %v834
          %v1534 = vunpack.c.h.b16 %v834
          %v1535 = vunpack.c.l.b16 %v835
          %v1536 = vunpack.c.h.b16 %v835
          %v1537 = vunpack.c.l.b16 %v836
          %v1538 = vunpack.c.h.b16 %v836
          %v1539 = vunpack.c.l.b16 %v837
          %v1540 = vunpack.c.h.b16 %v837
          %v1541 = vunpack.c.l.b16 %v838
          %v1542 = vunpack.c.h.b16 %v838
          %v1543 = vunpack.c.l.b16 %v839
          %v1544 = vunpack.c.h.b16 %v839
          %v1545 = vunpack.c.l.b16 %v840
          %v1546 = vunpack.c.h.b16 %v840
          %v1547 = vunpack.c.l.b16 %v841
          %v1548 = vunpack.c.h.b16 %v841
          %v1549 = vunpack.c.l.b16 %v842
          %v1550 = vunpack.c.h.b16 %v842
          %v1551 = vunpack.c.l.b16 %v843
          %v1552 = vunpack.c.h.b16 %v843
          %v1553 = vunpack.c.l.b16 %v844
          %v1554 = vunpack.c.h.b16 %v844
          %v1555 = vunpack.c.l.b16 %v845
          %v1556 = vunpack.c.h.b16 %v845
          %v1557 = vunpack.c.l.b16 %v846
          %v1558 = vunpack.c.h.b16 %v846
          %v1559 = vunpack.c.l.b16 %v847
          %v1560 = vunpack.c.h.b16 %v847
          %v1561 = vunpack.c.l.b16 %v848
          %v1562 = vunpack.c.h.b16 %v848
          %v1563 = vunpack.c.l.b16 %v849
          %v1564 = vunpack.c.h.b16 %v849
          %v1565 = vunpack.c.l.b16 %v850
          %v1566 = vunpack.c.h.b16 %v850
          %v1567 = vunpack.c.l.b16 %v851
          %v1568 = vunpack.c.h.b16 %v851
          %v1569 = vunpack.c.l.b16 %v852
          %v1570 = vunpack.c.h.b16 %v852
          %v1571 = vunpack.c.l.b16 %v853
          %v1572 = vunpack.c.h.b16 %v853
          %v1573 = vunpack.c.l.b16 %v854
          %v1574 = vunpack.c.h.b16 %v854
          %v1575 = vunpack.c.l.b16 %v855
          %v1576 = vunpack.c.h.b16 %v855
          %v1577 = vunpack.c.l.b16 %v856
          %v1578 = vunpack.c.h.b16 %v856
          %v1579 = vunpack.c.l.b16 %v857
          %v1580 = vunpack.c.h.b16 %v857
          %v1581 = vunpack.c.l.b16 %v858
          %v1582 = vunpack.c.h.b16 %v858
          %v1583 = vunpack.c.l.b16 %v859
          %v1584 = vunpack.c.h.b16 %v859
          %v1585 = vunpack.c.l.b16 %v860
          %v1586 = vunpack.c.h.b16 %v860
          %v1587 = vunpack.c.l.b16 %v861
          %v1588 = vunpack.c.h.b16 %v861
          %v1589 = vunpack.c.l.b16 %v862
          %v1590 = vunpack.c.h.b16 %v862
          %v1591 = vunpack.c.l.b16 %v863
          %v1592 = vunpack.c.h.b16 %v863
          %v1593 = vunpack.c.l.b16 %v864
          %v1594 = vunpack.c.h.b16 %v864
          %v1595 = vunpack.c.l.b16 %v865
          %v1596 = vunpack.c.h.b16 %v865
          %v1597 = vunpack.c.l.b16 %v866
          %v1598 = vunpack.c.h.b16 %v866
          %v1599 = vunpack.c.l.b16 %v867
          %v1600 = vunpack.c.h.b16 %v867
          %v1601 = vunpack.c.l.b16 %v868
          %v1602 = vunpack.c.h.b16 %v868
          %v1603 = vunpack.c.l.b16 %v869
          %v1604 = vunpack.c.h.b16 %v869
          %v1605 = vunpack.c.l.b16 %v870
          %v1606 = vunpack.c.h.b16 %v870
          %v1607 = vunpack.c.l.b16 %v871
          %v1608 = vunpack.c.h.b16 %v871
          %v1609 = vunpack.c.l.b16 %v872
          %v1610 = vunpack.c.h.b16 %v872
          %v1611 = vunpack.c.l.b16 %v873
          %v1612 = vunpack.c.h.b16 %v873
          %v1613 = vunpack.c.l.b16 %v874
          %v1614 = vunpack.c.h.b16 %v874
          %v1615 = vunpack.c.l.b16 %v875
          %v1616 = vunpack.c.h.b16 %v875
          %v1617 = vunpack.c.l.b16 %v876
          %v1618 = vunpack.c.h.b16 %v876
          %v1619 = vunpack.c.l.b16 %v877
          %v1620 = vunpack.c.h.b16 %v877
          %v1621 = vunpack.c.l.b16 %v878
          %v1622 = vunpack.c.h.b16 %v878
          %v1623 = vunpack.c.l.b16 %v879
          %v1624 = vunpack.c.h.b16 %v879
          %v1625 = vunpack.c.l.b16 %v880
          %v1626 = vunpack.c.h.b16 %v880
          %v1627 = vunpack.c.l.b16 %v881
          %v1628 = vunpack.c.h.b16 %v881
          %v1629 = vunpack.c.l.b16 %v882
          %v1630 = vunpack.c.h.b16 %v882
          %v1631 = vunpack.c.l.b16 %v883
          %v1632 = vunpack.c.h.b16 %v883
          %v1633 = vunpack.c.l.b16 %v884
          %v1634 = vunpack.c.h.b16 %v884
          %v1635 = vunpack.c.l.b16 %v885
          %v1636 = vunpack.c.h.b16 %v885
          %v1637 = vunpack.c.l.b16 %v886
          %v1638 = vunpack.c.h.b16 %v886
          %v1639 = vunpack.c.l.b16 %v887
          %v1640 = vunpack.c.h.b16 %v887
          %v1641 = vunpack.c.l.b16 %v888
          %v1642 = vunpack.c.h.b16 %v888
          %v1643 = vunpack.c.l.b16 %v889
          %v1644 = vunpack.c.h.b16 %v889
          %v1645 = vunpack.c.l.b16 %v890
          %v1646 = vunpack.c.h.b16 %v890
          %v1647 = vunpack.c.l.b16 %v891
          %v1648 = vunpack.c.h.b16 %v891
          %v1649 = vunpack.c.l.b16 %v892
          %v1650 = vunpack.c.h.b16 %v892
          %v1651 = vunpack.c.l.b16 %v893
          %v1652 = vunpack.c.h.b16 %v893
          %v1653 = vunpack.c.l.b16 %v894
          %v1654 = vunpack.c.h.b16 %v894
          %v1655 = vunpack.c.l.b16 %v895
          %v1656 = vunpack.c.h.b16 %v895
          %v1657 = vunpack.c.l.b16 %v896
          %v1658 = vunpack.c.h.b16 %v896
          %v1659 = vunpack.c.l.b16 %v897
          %v1660 = vunpack.c.h.b16 %v897
          %v1661 = vunpack.c.l.b16 %v898
          %v1662 = vunpack.c.h.b16 %v898
          %v1663 = vunpack.c.l.b16 %v899
          %v1664 = vunpack.c.h.b16 %v899
          %v1665 = vunpack.c.l.b16 %v900
          %v1666 = vunpack.c.h.b16 %v900
          %v1667 = vunpack.c.l.b16 %v901
          %v1668 = vunpack.c.h.b16 %v901
          %v1669 = vunpack.c.l.b16 %v902
          %v1670 = vunpack.c.h.b16 %v902
          %v1671 = vunpack.c.l.b16 %v903
          %v1672 = vunpack.c.h.b16 %v903
          %v1673 = vunpack.c.l.b16 %v904
          %v1674 = vunpack.c.h.b16 %v904
          %v1675 = vunpack.c.l.b16 %v905
          %v1676 = vunpack.c.h.b16 %v905
          %v1677 = vunpack.c.l.b16 %v906
          %v1678 = vunpack.c.h.b16 %v906
          %v1679 = vunpack.c.l.b16 %v907
          %v1680 = vunpack.c.h.b16 %v907
          %v1681 = vunpack.c.l.b16 %v908
          %v1682 = vunpack.c.h.b16 %v908
          %v1683 = vunpack.c.l.b16 %v909
          %v1684 = vunpack.c.h.b16 %v909
          %v1685 = vunpack.c.l.b16 %v910
          %v1686 = vunpack.c.h.b16 %v910
          %v1687 = vunpack.c.l.b16 %v911
          %v1688 = vunpack.c.h.b16 %v911
          %v1689 = vunpack.c.l.b16 %v912
          %v1690 = vunpack.c.h.b16 %v912
          %v1691 = vpack.c.b16 %v1183, %v1179
          %v1692 = vpack.c.b16 %v1184, %v1180
          %v1693 = vpack.c.b16 %v1185, %v1181
          %v1694 = vpack.c.b16 %v1186, %v1182
          %v1695 = vpack.c.b16 %v1191, %v1187
          %v1696 = vpack.c.b16 %v1192, %v1188
          %v1697 = vpack.c.b16 %v1193, %v1189
          %v1698 = vpack.c.b16 %v1194, %v1190
          %v1699 = vpack.c.b16 %v1199, %v1195
          %v1700 = vpack.c.b16 %v1200, %v1196
          %v1701 = vpack.c.b16 %v1201, %v1197
          %v1702 = vpack.c.b16 %v1202, %v1198
          %v1703 = vpack.c.b16 %v1207, %v1203
          %v1704 = vpack.c.b16 %v1208, %v1204
          %v1705 = vpack.c.b16 %v1209, %v1205
          %v1706 = vpack.c.b16 %v1210, %v1206
          %v1707 = vpack.c.b16 %v1215, %v1211
          %v1708 = vpack.c.b16 %v1216, %v1212
          %v1709 = vpack.c.b16 %v1217, %v1213
          %v1710 = vpack.c.b16 %v1218, %v1214
          %v1711 = vpack.c.b16 %v1223, %v1219
          %v1712 = vpack.c.b16 %v1224, %v1220
          %v1713 = vpack.c.b16 %v1225, %v1221
          %v1714 = vpack.c.b16 %v1226, %v1222
          %v1715 = vpack.c.b16 %v1231, %v1227
          %v1716 = vpack.c.b16 %v1232, %v1228
          %v1717 = vpack.c.b16 %v1233, %v1229
          %v1718 = vpack.c.b16 %v1234, %v1230
          %v1719 = vpack.c.b16 %v1239, %v1235
          %v1720 = vpack.c.b16 %v1240, %v1236
          %v1721 = vpack.c.b16 %v1241, %v1237
          %v1722 = vpack.c.b16 %v1242, %v1238
          %v1723 = vpack.c.b16 %v1247, %v1243
          %v1724 = vpack.c.b16 %v1248, %v1244
          %v1725 = vpack.c.b16 %v1249, %v1245
          %v1726 = vpack.c.b16 %v1250, %v1246
          %v1727 = vpack.c.b16 %v1255, %v1251
          %v1728 = vpack.c.b16 %v1256, %v1252
          %v1729 = vpack.c.b16 %v1257, %v1253
          %v1730 = vpack.c.b16 %v1258, %v1254
          %v1731 = vpack.c.b16 %v1263, %v1259
          %v1732 = vpack.c.b16 %v1264, %v1260
          %v1733 = vpack.c.b16 %v1265, %v1261
          %v1734 = vpack.c.b16 %v1266, %v1262
          %v1735 = vpack.c.b16 %v1271, %v1267
          %v1736 = vpack.c.b16 %v1272, %v1268
          %v1737 = vpack.c.b16 %v1273, %v1269
          %v1738 = vpack.c.b16 %v1274, %v1270
          %v1739 = vpack.c.b16 %v1279, %v1275
          %v1740 = vpack.c.b16 %v1280, %v1276
          %v1741 = vpack.c.b16 %v1281, %v1277
          %v1742 = vpack.c.b16 %v1282, %v1278
          %v1743 = vpack.c.b16 %v1287, %v1283
          %v1744 = vpack.c.b16 %v1288, %v1284
          %v1745 = vpack.c.b16 %v1289, %v1285
          %v1746 = vpack.c.b16 %v1290, %v1286
          %v1747 = vpack.c.b16 %v1295, %v1291
          %v1748 = vpack.c.b16 %v1296, %v1292
          %v1749 = vpack.c.b16 %v1297, %v1293
          %v1750 = vpack.c.b16 %v1298, %v1294
          %v1751 = vpack.c.b16 %v1303, %v1299
          %v1752 = vpack.c.b16 %v1304, %v1300
          %v1753 = vpack.c.b16 %v1305, %v1301
          %v1754 = vpack.c.b16 %v1306, %v1302
          %v1755 = vpack.c.b16 %v1311, %v1307
          %v1756 = vpack.c.b16 %v1312, %v1308
          %v1757 = vpack.c.b16 %v1313, %v1309
          %v1758 = vpack.c.b16 %v1314, %v1310
          %v1759 = vpack.c.b16 %v1319, %v1315
          %v1760 = vpack.c.b16 %v1320, %v1316
          %v1761 = vpack.c.b16 %v1321, %v1317
          %v1762 = vpack.c.b16 %v1322, %v1318
          %v1763 = vpack.c.b16 %v1327, %v1323
          %v1764 = vpack.c.b16 %v1328, %v1324
          %v1765 = vpack.c.b16 %v1329, %v1325
          %v1766 = vpack.c.b16 %v1330, %v1326
          %v1767 = vpack.c.b16 %v1335, %v1331
          %v1768 = vpack.c.b16 %v1336, %v1332
          %v1769 = vpack.c.b16 %v1337, %v1333
          %v1770 = vpack.c.b16 %v1338, %v1334
          %v1771 = vpack.c.b16 %v1343, %v1339
          %v1772 = vpack.c.b16 %v1344, %v1340
          %v1773 = vpack.c.b16 %v1345, %v1341
          %v1774 = vpack.c.b16 %v1346, %v1342
          %v1775 = vpack.c.b16 %v1351, %v1347
          %v1776 = vpack.c.b16 %v1352, %v1348
          %v1777 = vpack.c.b16 %v1353, %v1349
          %v1778 = vpack.c.b16 %v1354, %v1350
          %v1779 = vpack.c.b16 %v1359, %v1355
          %v1780 = vpack.c.b16 %v1360, %v1356
          %v1781 = vpack.c.b16 %v1361, %v1357
          %v1782 = vpack.c.b16 %v1362, %v1358
          %v1783 = vpack.c.b16 %v1367, %v1363
          %v1784 = vpack.c.b16 %v1368, %v1364
          %v1785 = vpack.c.b16 %v1369, %v1365
          %v1786 = vpack.c.b16 %v1370, %v1366
          %v1787 = vpack.c.b16 %v1375, %v1371
          %v1788 = vpack.c.b16 %v1376, %v1372
          %v1789 = vpack.c.b16 %v1377, %v1373
          %v1790 = vpack.c.b16 %v1378, %v1374
          %v1791 = vpack.c.b16 %v1383, %v1379
          %v1792 = vpack.c.b16 %v1384, %v1380
          %v1793 = vpack.c.b16 %v1385, %v1381
          %v1794 = vpack.c.b16 %v1386, %v1382
          %v1795 = vpack.c.b16 %v1391, %v1387
          %v1796 = vpack.c.b16 %v1392, %v1388
          %v1797 = vpack.c.b16 %v1393, %v1389
          %v1798 = vpack.c.b16 %v1394, %v1390
          %v1799 = vpack.c.b16 %v1399, %v1395
          %v1800 = vpack.c.b16 %v1400, %v1396
          %v1801 = vpack.c.b16 %v1401, %v1397
          %v1802 = vpack.c.b16 %v1402, %v1398
          %v1803 = vpack.c.b16 %v1407, %v1403
          %v1804 = vpack.c.b16 %v1408, %v1404
          %v1805 = vpack.c.b16 %v1409, %v1405
          %v1806 = vpack.c.b16 %v1410, %v1406
          %v1807 = vpack.c.b16 %v1415, %v1411
          %v1808 = vpack.c.b16 %v1416, %v1412
          %v1809 = vpack.c.b16 %v1417, %v1413
          %v1810 = vpack.c.b16 %v1418, %v1414
          %v1811 = vpack.c.b16 %v1423, %v1419
          %v1812 = vpack.c.b16 %v1424, %v1420
          %v1813 = vpack.c.b16 %v1425, %v1421
          %v1814 = vpack.c.b16 %v1426, %v1422
          %v1815 = vpack.c.b16 %v1431, %v1427
          %v1816 = vpack.c.b16 %v1432, %v1428
          %v1817 = vpack.c.b16 %v1433, %v1429
          %v1818 = vpack.c.b16 %v1434, %v1430
          %v1819 = vpack.c.b16 %v1439, %v1435
          %v1820 = vpack.c.b16 %v1440, %v1436
          %v1821 = vpack.c.b16 %v1441, %v1437
          %v1822 = vpack.c.b16 %v1442, %v1438
          %v1823 = vpack.c.b16 %v1447, %v1443
          %v1824 = vpack.c.b16 %v1448, %v1444
          %v1825 = vpack.c.b16 %v1449, %v1445
          %v1826 = vpack.c.b16 %v1450, %v1446
          %v1827 = vpack.c.b16 %v1455, %v1451
          %v1828 = vpack.c.b16 %v1456, %v1452
          %v1829 = vpack.c.b16 %v1457, %v1453
          %v1830 = vpack.c.b16 %v1458, %v1454
          %v1831 = vpack.c.b16 %v1463, %v1459
          %v1832 = vpack.c.b16 %v1464, %v1460
          %v1833 = vpack.c.b16 %v1465, %v1461
          %v1834 = vpack.c.b16 %v1466, %v1462
          %v1835 = vpack.c.b16 %v1471, %v1467
          %v1836 = vpack.c.b16 %v1472, %v1468
          %v1837 = vpack.c.b16 %v1473, %v1469
          %v1838 = vpack.c.b16 %v1474, %v1470
          %v1839 = vpack.c.b16 %v1479, %v1475
          %v1840 = vpack.c.b16 %v1480, %v1476
          %v1841 = vpack.c.b16 %v1481, %v1477
          %v1842 = vpack.c.b16 %v1482, %v1478
          %v1843 = vpack.c.b16 %v1487, %v1483
          %v1844 = vpack.c.b16 %v1488, %v1484
          %v1845 = vpack.c.b16 %v1489, %v1485
          %v1846 = vpack.c.b16 %v1490, %v1486
          %v1847 = vpack.c.b16 %v1495, %v1491
          %v1848 = vpack.c.b16 %v1496, %v1492
          %v1849 = vpack.c.b16 %v1497, %v1493
          %v1850 = vpack.c.b16 %v1498, %v1494
          %v1851 = vpack.c.b16 %v1503, %v1499
          %v1852 = vpack.c.b16 %v1504, %v1500
          %v1853 = vpack.c.b16 %v1505, %v1501
          %v1854 = vpack.c.b16 %v1506, %v1502
          %v1855 = vpack.c.b16 %v1511, %v1507
          %v1856 = vpack.c.b16 %v1512, %v1508
          %v1857 = vpack.c.b16 %v1513, %v1509
          %v1858 = vpack.c.b16 %v1514, %v1510
          %v1859 = vpack.c.b16 %v1519, %v1515
          %v1860 = vpack.c.b16 %v1520, %v1516
          %v1861 = vpack.c.b16 %v1521, %v1517
          %v1862 = vpack.c.b16 %v1522, %v1518
          %v1863 = vpack.c.b16 %v1527, %v1523
          %v1864 = vpack.c.b16 %v1528, %v1524
          %v1865 = vpack.c.b16 %v1529, %v1525
          %v1866 = vpack.c.b16 %v1530, %v1526
          %v1867 = vpack.c.b16 %v1535, %v1531
          %v1868 = vpack.c.b16 %v1536, %v1532
          %v1869 = vpack.c.b16 %v1537, %v1533
          %v1870 = vpack.c.b16 %v1538, %v1534
          %v1871 = vpack.c.b16 %v1543, %v1539
          %v1872 = vpack.c.b16 %v1544, %v1540
          %v1873 = vpack.c.b16 %v1545, %v1541
          %v1874 = vpack.c.b16 %v1546, %v1542
          %v1875 = vpack.c.b16 %v1551, %v1547
          %v1876 = vpack.c.b16 %v1552, %v1548
          %v1877 = vpack.c.b16 %v1553, %v1549
          %v1878 = vpack.c.b16 %v1554, %v1550
          %v1879 = vpack.c.b16 %v1559, %v1555
          %v1880 = vpack.c.b16 %v1560, %v1556
          %v1881 = vpack.c.b16 %v1561, %v1557
          %v1882 = vpack.c.b16 %v1562, %v1558
          %v1883 = vpack.c.b16 %v1567, %v1563
          %v1884 = vpack.c.b16 %v1568, %v1564
          %v1885 = vpack.c.b16 %v1569, %v1565
          %v1886 = vpack.c.b16 %v1570, %v1566
          %v1887 = vpack.c.b16 %v1575, %v1571
          %v1888 = vpack.c.b16 %v1576, %v1572
          %v1889 = vpack.c.b16 %v1577, %v1573
          %v1890 = vpack.c.b16 %v1578, %v1574
          %v1891 = vpack.c.b16 %v1583, %v1579
          %v1892 = vpack.c.b16 %v1584, %v1580
          %v1893 = vpack.c.b16 %v1585, %v1581
          %v1894 = vpack.c.b16 %v1586, %v1582
          %v1895 = vpack.c.b16 %v1591, %v1587
          %v1896 = vpack.c.b16 %v1592, %v1588
          %v1897 = vpack.c.b16 %v1593, %v1589
          %v1898 = vpack.c.b16 %v1594, %v1590
          %v1899 = vpack.c.b16 %v1599, %v1595
          %v1900 = vpack.c.b16 %v1600, %v1596
          %v1901 = vpack.c.b16 %v1601, %v1597
          %v1902 = vpack.c.b16 %v1602, %v1598
          %v1903 = vpack.c.b16 %v1607, %v1603
          %v1904 = vpack.c.b16 %v1608, %v1604
          %v1905 = vpack.c.b16 %v1609, %v1605
          %v1906 = vpack.c.b16 %v1610, %v1606
          %v1907 = vpack.c.b16 %v1615, %v1611
          %v1908 = vpack.c.b16 %v1616, %v1612
          %v1909 = vpack.c.b16 %v1617, %v1613
          %v1910 = vpack.c.b16 %v1618, %v1614
          %v1911 = vpack.c.b16 %v1623, %v1619
          %v1912 = vpack.c.b16 %v1624, %v1620
          %v1913 = vpack.c.b16 %v1625, %v1621
          %v1914 = vpack.c.b16 %v1626, %v1622
          %v1915 = vpack.c.b16 %v1631, %v1627
          %v1916 = vpack.c.b16 %v1632, %v1628
          %v1917 = vpack.c.b16 %v1633, %v1629
          %v1918 = vpack.c.b16 %v1634, %v1630
          %v1919 = vpack.c.b16 %v1639, %v1635
          %v1920 = vpack.c.b16 %v1640, %v1636
          %v1921 = vpack.c.b16 %v1641, %v1637
          %v1922 = vpack.c.b16 %v1642, %v1638
          %v1923 = vpack.c.b16 %v1647, %v1643
          %v1924 = vpack.c.b16 %v1648, %v1644
          %v1925 = vpack.c.b16 %v1649, %v1645
          %v1926 = vpack.c.b16 %v1650, %v1646
          %v1927 = vpack.c.b16 %v1655, %v1651
          %v1928 = vpack.c.b16 %v1656, %v1652
          %v1929 = vpack.c.b16 %v1657, %v1653
          %v1930 = vpack.c.b16 %v1658, %v1654
          %v1931 = vpack.c.b16 %v1663, %v1659
          %v1932 = vpack.c.b16 %v1664, %v1660
          %v1933 = vpack.c.b16 %v1665, %v1661
          %v1934 = vpack.c.b16 %v1666, %v1662
          %v1935 = vpack.c.b16 %v1671, %v1667
          %v1936 = vpack.c.b16 %v1672, %v1668
          %v1937 = vpack.c.b16 %v1673, %v1669
          %v1938 = vpack.c.b16 %v1674, %v1670
          %v1939 = vpack.c.b16 %v1679, %v1675
          %v1940 = vpack.c.b16 %v1680, %v1676
          %v1941 = vpack.c.b16 %v1681, %v1677
          %v1942 = vpack.c.b16 %v1682, %v1678
          %v1943 = vpack.c.b16 %v1687, %v1683
          %v1944 = vpack.c.b16 %v1688, %v1684
          %v1945 = vpack.c.b16 %v1689, %v1685
          %v1946 = vpack.c.b16 %v1690, %v1686
          %2203 = vmatpush.bf16.msra.mxu0 %v1719
          %2204 = vmatpush.bf16.msra.mxu0 %v1715
          %2205 = vmatpush.bf16.msra.mxu0 %v1711
          %2206 = vmatpush.bf16.msra.mxu0 %v1707
          %2207 = vmatpush.bf16.msra.mxu0 %v1703
          %2208 = vmatpush.bf16.msra.mxu0 %v1699
          %2209 = vmatpush.bf16.msra.mxu0 %v1695
          %2210 = vmatpush.bf16.msra.mxu0 %v1691
          %2211 = vmatmul.bf16.gmra.mxu0 %v649
          %v2212 = vpop.f32.mrf.mxu0
          %v2213 = vadd.f32 %v915, %v2212
          %v2214 = vpop.f32.mrf.mxu0
          %2215 = vdwg.mxu0
          %2216 = vmatpush.bf16.msra.mxu0 %v1751
          %2217 = vmatpush.bf16.msra.mxu0 %v1747
          %2218 = vmatpush.bf16.msra.mxu0 %v1743
          %2219 = vmatpush.bf16.msra.mxu0 %v1739
          %2220 = vmatpush.bf16.msra.mxu0 %v1735
          %2221 = vmatpush.bf16.msra.mxu0 %v1731
          %2222 = vmatpush.bf16.msra.mxu0 %v1727
          %2223 = vmatpush.bf16.msra.mxu0 %v1723
          %2224 = vmatmul.bf16.gmra.mxu0 %v650
          %v2225 = vpop.f32.mrf.mxu0
          %v2226 = vadd.f32 %v2213, %v2225
          %v2227 = vpop.f32.mrf.mxu0
          %2228 = vdwg.mxu0
          %2229 = vmatpush.bf16.msra.mxu0 %v1783
          %2230 = vmatpush.bf16.msra.mxu0 %v1779
          %2231 = vmatpush.bf16.msra.mxu0 %v1775
          %2232 = vmatpush.bf16.msra.mxu0 %v1771
          %2233 = vmatpush.bf16.msra.mxu0 %v1767
          %2234 = vmatpush.bf16.msra.mxu0 %v1763
          %2235 = vmatpush.bf16.msra.mxu0 %v1759
          %2236 = vmatpush.bf16.msra.mxu0 %v1755
          %2237 = vmatmul.bf16.gmra.mxu0 %v651
          %v2238 = vpop.f32.mrf.mxu0
          %v2239 = vadd.f32 %v2226, %v2238
          %v2240 = vpop.f32.mrf.mxu0
          %2241 = vdwg.mxu0
          %2242 = vmatpush.bf16.msra.mxu0 %v1815
          %2243 = vmatpush.bf16.msra.mxu0 %v1811
          %2244 = vmatpush.bf16.msra.mxu0 %v1807
          %2245 = vmatpush.bf16.msra.mxu0 %v1803
          %2246 = vmatpush.bf16.msra.mxu0 %v1799
          %2247 = vmatpush.bf16.msra.mxu0 %v1795
          %2248 = vmatpush.bf16.msra.mxu0 %v1791
          %2249 = vmatpush.bf16.msra.mxu0 %v1787
          %2250 = vmatmul.bf16.gmra.mxu0 %v652
          %v2251 = vpop.f32.mrf.mxu0
          %v2252 = vadd.f32 %v2239, %v2251
          %v2253 = vpop.f32.mrf.mxu0
          %2254 = vdwg.mxu0
          %2255 = vmatpush.bf16.msra.mxu0 %v1847
          %2256 = vmatpush.bf16.msra.mxu0 %v1843
          %2257 = vmatpush.bf16.msra.mxu0 %v1839
          %2258 = vmatpush.bf16.msra.mxu0 %v1835
          %2259 = vmatpush.bf16.msra.mxu0 %v1831
          %2260 = vmatpush.bf16.msra.mxu0 %v1827
          %2261 = vmatpush.bf16.msra.mxu0 %v1823
          %2262 = vmatpush.bf16.msra.mxu0 %v1819
          %2263 = vmatmul.bf16.gmra.mxu0 %v653
          %v2264 = vpop.f32.mrf.mxu0
          %v2265 = vadd.f32 %v2252, %v2264
          %v2266 = vpop.f32.mrf.mxu0
          %2267 = vdwg.mxu0
          %2268 = vmatpush.bf16.msra.mxu0 %v1879
          %2269 = vmatpush.bf16.msra.mxu0 %v1875
          %2270 = vmatpush.bf16.msra.mxu0 %v1871
          %2271 = vmatpush.bf16.msra.mxu0 %v1867
          %2272 = vmatpush.bf16.msra.mxu0 %v1863
          %2273 = vmatpush.bf16.msra.mxu0 %v1859
          %2274 = vmatpush.bf16.msra.mxu0 %v1855
          %2275 = vmatpush.bf16.msra.mxu0 %v1851
          %2276 = vmatmul.bf16.gmra.mxu0 %v654
          %v2277 = vpop.f32.mrf.mxu0
          %v2278 = vadd.f32 %v2265, %v2277
          %v2279 = vpop.f32.mrf.mxu0
          %2280 = vdwg.mxu0
          %2281 = vmatpush.bf16.msra.mxu0 %v1911
          %2282 = vmatpush.bf16.msra.mxu0 %v1907
          %2283 = vmatpush.bf16.msra.mxu0 %v1903
          %2284 = vmatpush.bf16.msra.mxu0 %v1899
          %2285 = vmatpush.bf16.msra.mxu0 %v1895
          %2286 = vmatpush.bf16.msra.mxu0 %v1891
          %2287 = vmatpush.bf16.msra.mxu0 %v1887
          %2288 = vmatpush.bf16.msra.mxu0 %v1883
          %2289 = vmatmul.bf16.gmra.mxu0 %v655
          %v2290 = vpop.f32.mrf.mxu0
          %v2291 = vadd.f32 %v2278, %v2290
          %v2292 = vpop.f32.mrf.mxu0
          %2293 = vdwg.mxu0
          %2294 = vmatpush.bf16.msra.mxu0 %v1943
          %2295 = vmatpush.bf16.msra.mxu0 %v1939
          %2296 = vmatpush.bf16.msra.mxu0 %v1935
          %2297 = vmatpush.bf16.msra.mxu0 %v1931
          %2298 = vmatpush.bf16.msra.mxu0 %v1927
          %2299 = vmatpush.bf16.msra.mxu0 %v1923
          %2300 = vmatpush.bf16.msra.mxu0 %v1919
          %2301 = vmatpush.bf16.msra.mxu0 %v1915
          %2302 = vmatmul.bf16.gmra.mxu0 %v656
          %v2303 = vpop.f32.mrf.mxu0
          %v2304 = vadd.f32 %v2291, %v2303
          %v2305 = vpop.f32.mrf.mxu0
          %2306 = vdwg.mxu0
          %2307 = vmatpush.bf16.msra.mxu0 %v1720
          %2308 = vmatpush.bf16.msra.mxu0 %v1716
          %2309 = vmatpush.bf16.msra.mxu0 %v1712
          %2310 = vmatpush.bf16.msra.mxu0 %v1708
          %2311 = vmatpush.bf16.msra.mxu0 %v1704
          %2312 = vmatpush.bf16.msra.mxu0 %v1700
          %2313 = vmatpush.bf16.msra.mxu0 %v1696
          %2314 = vmatpush.bf16.msra.mxu0 %v1692
          %2315 = vmatmul.bf16.gmra.mxu0 %v649
          %v2316 = vpop.f32.mrf.mxu0
          %v2317 = vadd.f32 %v916, %v2316
          %v2318 = vpop.f32.mrf.mxu0
          %2319 = vdwg.mxu0
          %2320 = vmatpush.bf16.msra.mxu0 %v1752
          %2321 = vmatpush.bf16.msra.mxu0 %v1748
          %2322 = vmatpush.bf16.msra.mxu0 %v1744
          %2323 = vmatpush.bf16.msra.mxu0 %v1740
          %2324 = vmatpush.bf16.msra.mxu0 %v1736
          %2325 = vmatpush.bf16.msra.mxu0 %v1732
          %2326 = vmatpush.bf16.msra.mxu0 %v1728
          %2327 = vmatpush.bf16.msra.mxu0 %v1724
          %2328 = vmatmul.bf16.gmra.mxu0 %v650
          %v2329 = vpop.f32.mrf.mxu0
          %v2330 = vadd.f32 %v2317, %v2329
          %v2331 = vpop.f32.mrf.mxu0
          %2332 = vdwg.mxu0
          %2333 = vmatpush.bf16.msra.mxu0 %v1784
          %2334 = vmatpush.bf16.msra.mxu0 %v1780
          %2335 = vmatpush.bf16.msra.mxu0 %v1776
          %2336 = vmatpush.bf16.msra.mxu0 %v1772
          %2337 = vmatpush.bf16.msra.mxu0 %v1768
          %2338 = vmatpush.bf16.msra.mxu0 %v1764
          %2339 = vmatpush.bf16.msra.mxu0 %v1760
          %2340 = vmatpush.bf16.msra.mxu0 %v1756
          %2341 = vmatmul.bf16.gmra.mxu0 %v651
          %v2342 = vpop.f32.mrf.mxu0
          %v2343 = vadd.f32 %v2330, %v2342
          %v2344 = vpop.f32.mrf.mxu0
          %2345 = vdwg.mxu0
          %2346 = vmatpush.bf16.msra.mxu0 %v1816
          %2347 = vmatpush.bf16.msra.mxu0 %v1812
          %2348 = vmatpush.bf16.msra.mxu0 %v1808
          %2349 = vmatpush.bf16.msra.mxu0 %v1804
          %2350 = vmatpush.bf16.msra.mxu0 %v1800
          %2351 = vmatpush.bf16.msra.mxu0 %v1796
          %2352 = vmatpush.bf16.msra.mxu0 %v1792
          %2353 = vmatpush.bf16.msra.mxu0 %v1788
          %2354 = vmatmul.bf16.gmra.mxu0 %v652
          %v2355 = vpop.f32.mrf.mxu0
          %v2356 = vadd.f32 %v2343, %v2355
          %v2357 = vpop.f32.mrf.mxu0
          %2358 = vdwg.mxu0
          %2359 = vmatpush.bf16.msra.mxu0 %v1848
          %2360 = vmatpush.bf16.msra.mxu0 %v1844
          %2361 = vmatpush.bf16.msra.mxu0 %v1840
          %2362 = vmatpush.bf16.msra.mxu0 %v1836
          %2363 = vmatpush.bf16.msra.mxu0 %v1832
          %2364 = vmatpush.bf16.msra.mxu0 %v1828
          %2365 = vmatpush.bf16.msra.mxu0 %v1824
          %2366 = vmatpush.bf16.msra.mxu0 %v1820
          %2367 = vmatmul.bf16.gmra.mxu0 %v653
          %v2368 = vpop.f32.mrf.mxu0
          %v2369 = vadd.f32 %v2356, %v2368
          %v2370 = vpop.f32.mrf.mxu0
          %2371 = vdwg.mxu0
          %2372 = vmatpush.bf16.msra.mxu0 %v1880
          %2373 = vmatpush.bf16.msra.mxu0 %v1876
          %2374 = vmatpush.bf16.msra.mxu0 %v1872
          %2375 = vmatpush.bf16.msra.mxu0 %v1868
          %2376 = vmatpush.bf16.msra.mxu0 %v1864
          %2377 = vmatpush.bf16.msra.mxu0 %v1860
          %2378 = vmatpush.bf16.msra.mxu0 %v1856
          %2379 = vmatpush.bf16.msra.mxu0 %v1852
          %2380 = vmatmul.bf16.gmra.mxu0 %v654
          %v2381 = vpop.f32.mrf.mxu0
          %v2382 = vadd.f32 %v2369, %v2381
          %v2383 = vpop.f32.mrf.mxu0
          %2384 = vdwg.mxu0
          %2385 = vmatpush.bf16.msra.mxu0 %v1912
          %2386 = vmatpush.bf16.msra.mxu0 %v1908
          %2387 = vmatpush.bf16.msra.mxu0 %v1904
          %2388 = vmatpush.bf16.msra.mxu0 %v1900
          %2389 = vmatpush.bf16.msra.mxu0 %v1896
          %2390 = vmatpush.bf16.msra.mxu0 %v1892
          %2391 = vmatpush.bf16.msra.mxu0 %v1888
          %2392 = vmatpush.bf16.msra.mxu0 %v1884
          %2393 = vmatmul.bf16.gmra.mxu0 %v655
          %v2394 = vpop.f32.mrf.mxu0
          %v2395 = vadd.f32 %v2382, %v2394
          %v2396 = vpop.f32.mrf.mxu0
          %2397 = vdwg.mxu0
          %2398 = vmatpush.bf16.msra.mxu0 %v1944
          %2399 = vmatpush.bf16.msra.mxu0 %v1940
          %2400 = vmatpush.bf16.msra.mxu0 %v1936
          %2401 = vmatpush.bf16.msra.mxu0 %v1932
          %2402 = vmatpush.bf16.msra.mxu0 %v1928
          %2403 = vmatpush.bf16.msra.mxu0 %v1924
          %2404 = vmatpush.bf16.msra.mxu0 %v1920
          %2405 = vmatpush.bf16.msra.mxu0 %v1916
          %2406 = vmatmul.bf16.gmra.mxu0 %v656
          %v2407 = vpop.f32.mrf.mxu0
          %v2408 = vadd.f32 %v2395, %v2407
          %v2409 = vpop.f32.mrf.mxu0
          %2410 = vdwg.mxu0
          %2411 = vmatpush.bf16.msra.mxu0 %v1721
          %2412 = vmatpush.bf16.msra.mxu0 %v1717
          %2413 = vmatpush.bf16.msra.mxu0 %v1713
          %2414 = vmatpush.bf16.msra.mxu0 %v1709
          %2415 = vmatpush.bf16.msra.mxu0 %v1705
          %2416 = vmatpush.bf16.msra.mxu0 %v1701
          %2417 = vmatpush.bf16.msra.mxu0 %v1697
          %2418 = vmatpush.bf16.msra.mxu0 %v1693
          %2419 = vmatmul.bf16.gmra.mxu0 %v649
          %v2420 = vpop.f32.mrf.mxu0
          %v2421 = vadd.f32 %v917, %v2420
          %v2422 = vpop.f32.mrf.mxu0
          %2423 = vdwg.mxu0
          %2424 = vmatpush.bf16.msra.mxu0 %v1753
          %2425 = vmatpush.bf16.msra.mxu0 %v1749
          %2426 = vmatpush.bf16.msra.mxu0 %v1745
          %2427 = vmatpush.bf16.msra.mxu0 %v1741
          %2428 = vmatpush.bf16.msra.mxu0 %v1737
          %2429 = vmatpush.bf16.msra.mxu0 %v1733
          %2430 = vmatpush.bf16.msra.mxu0 %v1729
          %2431 = vmatpush.bf16.msra.mxu0 %v1725
          %2432 = vmatmul.bf16.gmra.mxu0 %v650
          %v2433 = vpop.f32.mrf.mxu0
          %v2434 = vadd.f32 %v2421, %v2433
          %v2435 = vpop.f32.mrf.mxu0
          %2436 = vdwg.mxu0
          %2437 = vmatpush.bf16.msra.mxu0 %v1785
          %2438 = vmatpush.bf16.msra.mxu0 %v1781
          %2439 = vmatpush.bf16.msra.mxu0 %v1777
          %2440 = vmatpush.bf16.msra.mxu0 %v1773
          %2441 = vmatpush.bf16.msra.mxu0 %v1769
          %2442 = vmatpush.bf16.msra.mxu0 %v1765
          %2443 = vmatpush.bf16.msra.mxu0 %v1761
          %2444 = vmatpush.bf16.msra.mxu0 %v1757
          %2445 = vmatmul.bf16.gmra.mxu0 %v651
          %v2446 = vpop.f32.mrf.mxu0
          %v2447 = vadd.f32 %v2434, %v2446
          %v2448 = vpop.f32.mrf.mxu0
          %2449 = vdwg.mxu0
          %2450 = vmatpush.bf16.msra.mxu0 %v1817
          %2451 = vmatpush.bf16.msra.mxu0 %v1813
          %2452 = vmatpush.bf16.msra.mxu0 %v1809
          %2453 = vmatpush.bf16.msra.mxu0 %v1805
          %2454 = vmatpush.bf16.msra.mxu0 %v1801
          %2455 = vmatpush.bf16.msra.mxu0 %v1797
          %2456 = vmatpush.bf16.msra.mxu0 %v1793
          %2457 = vmatpush.bf16.msra.mxu0 %v1789
          %2458 = vmatmul.bf16.gmra.mxu0 %v652
          %v2459 = vpop.f32.mrf.mxu0
          %v2460 = vadd.f32 %v2447, %v2459
          %v2461 = vpop.f32.mrf.mxu0
          %2462 = vdwg.mxu0
          %2463 = vmatpush.bf16.msra.mxu0 %v1849
          %2464 = vmatpush.bf16.msra.mxu0 %v1845
          %2465 = vmatpush.bf16.msra.mxu0 %v1841
          %2466 = vmatpush.bf16.msra.mxu0 %v1837
          %2467 = vmatpush.bf16.msra.mxu0 %v1833
          %2468 = vmatpush.bf16.msra.mxu0 %v1829
          %2469 = vmatpush.bf16.msra.mxu0 %v1825
          %2470 = vmatpush.bf16.msra.mxu0 %v1821
          %2471 = vmatmul.bf16.gmra.mxu0 %v653
          %v2472 = vpop.f32.mrf.mxu0
          %v2473 = vadd.f32 %v2460, %v2472
          %v2474 = vpop.f32.mrf.mxu0
          %2475 = vdwg.mxu0
          %2476 = vmatpush.bf16.msra.mxu0 %v1881
          %2477 = vmatpush.bf16.msra.mxu0 %v1877
          %2478 = vmatpush.bf16.msra.mxu0 %v1873
          %2479 = vmatpush.bf16.msra.mxu0 %v1869
          %2480 = vmatpush.bf16.msra.mxu0 %v1865
          %2481 = vmatpush.bf16.msra.mxu0 %v1861
          %2482 = vmatpush.bf16.msra.mxu0 %v1857
          %2483 = vmatpush.bf16.msra.mxu0 %v1853
          %2484 = vmatmul.bf16.gmra.mxu0 %v654
          %v2485 = vpop.f32.mrf.mxu0
          %v2486 = vadd.f32 %v2473, %v2485
          %v2487 = vpop.f32.mrf.mxu0
          %2488 = vdwg.mxu0
          %2489 = vmatpush.bf16.msra.mxu0 %v1913
          %2490 = vmatpush.bf16.msra.mxu0 %v1909
          %2491 = vmatpush.bf16.msra.mxu0 %v1905
          %2492 = vmatpush.bf16.msra.mxu0 %v1901
          %2493 = vmatpush.bf16.msra.mxu0 %v1897
          %2494 = vmatpush.bf16.msra.mxu0 %v1893
          %2495 = vmatpush.bf16.msra.mxu0 %v1889
          %2496 = vmatpush.bf16.msra.mxu0 %v1885
          %2497 = vmatmul.bf16.gmra.mxu0 %v655
          %v2498 = vpop.f32.mrf.mxu0
          %v2499 = vadd.f32 %v2486, %v2498
          %v2500 = vpop.f32.mrf.mxu0
          %2501 = vdwg.mxu0
          %2502 = vmatpush.bf16.msra.mxu0 %v1945
          %2503 = vmatpush.bf16.msra.mxu0 %v1941
          %2504 = vmatpush.bf16.msra.mxu0 %v1937
          %2505 = vmatpush.bf16.msra.mxu0 %v1933
          %2506 = vmatpush.bf16.msra.mxu0 %v1929
          %2507 = vmatpush.bf16.msra.mxu0 %v1925
          %2508 = vmatpush.bf16.msra.mxu0 %v1921
          %2509 = vmatpush.bf16.msra.mxu0 %v1917
          %2510 = vmatmul.bf16.gmra.mxu0 %v656
          %v2511 = vpop.f32.mrf.mxu0
          %v2512 = vadd.f32 %v2499, %v2511
          %v2513 = vpop.f32.mrf.mxu0
          %2514 = vdwg.mxu0
          %2515 = vmatpush.bf16.msra.mxu0 %v1722
          %2516 = vmatpush.bf16.msra.mxu0 %v1718
          %2517 = vmatpush.bf16.msra.mxu0 %v1714
          %2518 = vmatpush.bf16.msra.mxu0 %v1710
          %2519 = vmatpush.bf16.msra.mxu0 %v1706
          %2520 = vmatpush.bf16.msra.mxu0 %v1702
          %2521 = vmatpush.bf16.msra.mxu0 %v1698
          %2522 = vmatpush.bf16.msra.mxu0 %v1694
          %2523 = vmatmul.bf16.gmra.mxu0 %v649
          %v2524 = vpop.f32.mrf.mxu0
          %v2525 = vadd.f32 %v918, %v2524
          %v2526 = vpop.f32.mrf.mxu0
          %2527 = vdwg.mxu0
          %2528 = vmatpush.bf16.msra.mxu0 %v1754
          %2529 = vmatpush.bf16.msra.mxu0 %v1750
          %2530 = vmatpush.bf16.msra.mxu0 %v1746
          %2531 = vmatpush.bf16.msra.mxu0 %v1742
          %2532 = vmatpush.bf16.msra.mxu0 %v1738
          %2533 = vmatpush.bf16.msra.mxu0 %v1734
          %2534 = vmatpush.bf16.msra.mxu0 %v1730
          %2535 = vmatpush.bf16.msra.mxu0 %v1726
          %2536 = vmatmul.bf16.gmra.mxu0 %v650
          %v2537 = vpop.f32.mrf.mxu0
          %v2538 = vadd.f32 %v2525, %v2537
          %v2539 = vpop.f32.mrf.mxu0
          %2540 = vdwg.mxu0
          %2541 = vmatpush.bf16.msra.mxu0 %v1786
          %2542 = vmatpush.bf16.msra.mxu0 %v1782
          %2543 = vmatpush.bf16.msra.mxu0 %v1778
          %2544 = vmatpush.bf16.msra.mxu0 %v1774
          %2545 = vmatpush.bf16.msra.mxu0 %v1770
          %2546 = vmatpush.bf16.msra.mxu0 %v1766
          %2547 = vmatpush.bf16.msra.mxu0 %v1762
          %2548 = vmatpush.bf16.msra.mxu0 %v1758
          %2549 = vmatmul.bf16.gmra.mxu0 %v651
          %v2550 = vpop.f32.mrf.mxu0
          %v2551 = vadd.f32 %v2538, %v2550
          %v2552 = vpop.f32.mrf.mxu0
          %2553 = vdwg.mxu0
          %2554 = vmatpush.bf16.msra.mxu0 %v1818
          %2555 = vmatpush.bf16.msra.mxu0 %v1814
          %2556 = vmatpush.bf16.msra.mxu0 %v1810
          %2557 = vmatpush.bf16.msra.mxu0 %v1806
          %2558 = vmatpush.bf16.msra.mxu0 %v1802
          %2559 = vmatpush.bf16.msra.mxu0 %v1798
          %2560 = vmatpush.bf16.msra.mxu0 %v1794
          %2561 = vmatpush.bf16.msra.mxu0 %v1790
          %2562 = vmatmul.bf16.gmra.mxu0 %v652
          %v2563 = vpop.f32.mrf.mxu0
          %v2564 = vadd.f32 %v2551, %v2563
          %v2565 = vpop.f32.mrf.mxu0
          %2566 = vdwg.mxu0
          %2567 = vmatpush.bf16.msra.mxu0 %v1850
          %2568 = vmatpush.bf16.msra.mxu0 %v1846
          %2569 = vmatpush.bf16.msra.mxu0 %v1842
          %2570 = vmatpush.bf16.msra.mxu0 %v1838
          %2571 = vmatpush.bf16.msra.mxu0 %v1834
          %2572 = vmatpush.bf16.msra.mxu0 %v1830
          %2573 = vmatpush.bf16.msra.mxu0 %v1826
          %2574 = vmatpush.bf16.msra.mxu0 %v1822
          %2575 = vmatmul.bf16.gmra.mxu0 %v653
          %v2576 = vpop.f32.mrf.mxu0
          %v2577 = vadd.f32 %v2564, %v2576
          %v2578 = vpop.f32.mrf.mxu0
          %2579 = vdwg.mxu0
          %2580 = vmatpush.bf16.msra.mxu0 %v1882
          %2581 = vmatpush.bf16.msra.mxu0 %v1878
          %2582 = vmatpush.bf16.msra.mxu0 %v1874
          %2583 = vmatpush.bf16.msra.mxu0 %v1870
          %2584 = vmatpush.bf16.msra.mxu0 %v1866
          %2585 = vmatpush.bf16.msra.mxu0 %v1862
          %2586 = vmatpush.bf16.msra.mxu0 %v1858
          %2587 = vmatpush.bf16.msra.mxu0 %v1854
          %2588 = vmatmul.bf16.gmra.mxu0 %v654
          %v2589 = vpop.f32.mrf.mxu0
          %v2590 = vadd.f32 %v2577, %v2589
          %v2591 = vpop.f32.mrf.mxu0
          %2592 = vdwg.mxu0
          %2593 = vmatpush.bf16.msra.mxu0 %v1914
          %2594 = vmatpush.bf16.msra.mxu0 %v1910
          %2595 = vmatpush.bf16.msra.mxu0 %v1906
          %2596 = vmatpush.bf16.msra.mxu0 %v1902
          %2597 = vmatpush.bf16.msra.mxu0 %v1898
          %2598 = vmatpush.bf16.msra.mxu0 %v1894
          %2599 = vmatpush.bf16.msra.mxu0 %v1890
          %2600 = vmatpush.bf16.msra.mxu0 %v1886
          %2601 = vmatmul.bf16.gmra.mxu0 %v655
          %v2602 = vpop.f32.mrf.mxu0
          %v2603 = vadd.f32 %v2590, %v2602
          %v2604 = vpop.f32.mrf.mxu0
          %2605 = vdwg.mxu0
          %2606 = vmatpush.bf16.msra.mxu0 %v1946
          %2607 = vmatpush.bf16.msra.mxu0 %v1942
          %2608 = vmatpush.bf16.msra.mxu0 %v1938
          %2609 = vmatpush.bf16.msra.mxu0 %v1934
          %2610 = vmatpush.bf16.msra.mxu0 %v1930
          %2611 = vmatpush.bf16.msra.mxu0 %v1926
          %2612 = vmatpush.bf16.msra.mxu0 %v1922
          %2613 = vmatpush.bf16.msra.mxu0 %v1918
          %2614 = vmatmul.bf16.gmra.mxu0 %v656
          %v2615 = vpop.f32.mrf.mxu0
          %v2616 = vadd.f32 %v2603, %v2615
          %v2617 = vpop.f32.mrf.mxu0
          %2618 = vdwg.mxu0
          %v2619 = vmax.f32 %v2304, 0.0
          %v2620 = vmax.f32 %v2408, 0.0
          %v2621 = vmax.f32 %v2512, 0.0
          %v2622 = vmax.f32 %v2616, 0.0
          %v2623 = vpack.c.bf16 %v2619, %v2619
          %v2624 = vpack.c.bf16 %v2620, %v2620
          %v2625 = vpack.c.bf16 %v2621, %v2621
          %v2626 = vpack.c.bf16 %v2622, %v2622
          %v2627 = vld [vmem:[%s5] sm:$0xf]
          %v2628 = vld [vmem:[%s5 + $0x4] sm:$0xf]
          %v2629 = vld [vmem:[%s5 + $0x8] sm:$0xf]
          %v2630 = vld [vmem:[%s5 + $0xc] sm:$0xf]
          %v2631 = vld [vmem:[%s5 + $0x10] sm:$0xf]
          %v2632 = vld [vmem:[%s5 + $0x14] sm:$0xf]
          %v2633 = vld [vmem:[%s5 + $0x18] sm:$0xf]
          %v2634 = vld [vmem:[%s5 + $0x1c] sm:$0xf]
          %v2635 = vld [vmem:[%s5 + $0x20] sm:$0xf]
          %v2636 = vld [vmem:[%s5 + $0x24] sm:$0xf]
          %v2637 = vld [vmem:[%s5 + $0x28] sm:$0xf]
          %v2638 = vld [vmem:[%s5 + $0x2c] sm:$0xf]
          %v2639 = vld [vmem:[%s5 + $0x30] sm:$0xf]
          %v2640 = vld [vmem:[%s5 + $0x34] sm:$0xf]
          %v2641 = vld [vmem:[%s5 + $0x38] sm:$0xf]
          %v2642 = vld [vmem:[%s5 + $0x3c] sm:$0xf]
          %v2643 = vld [vmem:[%s5 + $0x40] sm:$0xf]
          %v2644 = vld [vmem:[%s5 + $0x44] sm:$0xf]
          %v2645 = vld [vmem:[%s5 + $0x48] sm:$0xf]
          %v2646 = vld [vmem:[%s5 + $0x4c] sm:$0xf]
          %v2647 = vld [vmem:[%s5 + $0x50] sm:$0xf]
          %v2648 = vld [vmem:[%s5 + $0x54] sm:$0xf]
          %v2649 = vld [vmem:[%s5 + $0x58] sm:$0xf]
          %v2650 = vld [vmem:[%s5 + $0x5c] sm:$0xf]
          %v2651 = vld [vmem:[%s5 + $0x60] sm:$0xf]
          %v2652 = vld [vmem:[%s5 + $0x64] sm:$0xf]
          %v2653 = vld [vmem:[%s5 + $0x68] sm:$0xf]
          %v2654 = vld [vmem:[%s5 + $0x6c] sm:$0xf]
          %v2655 = vld [vmem:[%s5 + $0x70] sm:$0xf]
          %v2656 = vld [vmem:[%s5 + $0x74] sm:$0xf]
          %v2657 = vld [vmem:[%s5 + $0x78] sm:$0xf]
          %v2658 = vld [vmem:[%s5 + $0x7c] sm:$0xf]
          %v2659 = vld [vmem:[%s5 + $0x80] sm:$0xf]
          %v2660 = vld [vmem:[%s5 + $0x84] sm:$0xf]
          %v2661 = vld [vmem:[%s5 + $0x88] sm:$0xf]
          %v2662 = vld [vmem:[%s5 + $0x8c] sm:$0xf]
          %v2663 = vld [vmem:[%s5 + $0x90] sm:$0xf]
          %v2664 = vld [vmem:[%s5 + $0x94] sm:$0xf]
          %v2665 = vld [vmem:[%s5 + $0x98] sm:$0xf]
          %v2666 = vld [vmem:[%s5 + $0x9c] sm:$0xf]
          %v2667 = vld [vmem:[%s5 + $0xa0] sm:$0xf]
          %v2668 = vld [vmem:[%s5 + $0xa4] sm:$0xf]
          %v2669 = vld [vmem:[%s5 + $0xa8] sm:$0xf]
          %v2670 = vld [vmem:[%s5 + $0xac] sm:$0xf]
          %v2671 = vld [vmem:[%s5 + $0xb0] sm:$0xf]
          %v2672 = vld [vmem:[%s5 + $0xb4] sm:$0xf]
          %v2673 = vld [vmem:[%s5 + $0xb8] sm:$0xf]
          %v2674 = vld [vmem:[%s5 + $0xbc] sm:$0xf]
          %v2675 = vld [vmem:[%s5 + $0xc0] sm:$0xf]
          %v2676 = vld [vmem:[%s5 + $0xc4] sm:$0xf]
          %v2677 = vld [vmem:[%s5 + $0xc8] sm:$0xf]
          %v2678 = vld [vmem:[%s5 + $0xcc] sm:$0xf]
          %v2679 = vld [vmem:[%s5 + $0xd0] sm:$0xf]
          %v2680 = vld [vmem:[%s5 + $0xd4] sm:$0xf]
          %v2681 = vld [vmem:[%s5 + $0xd8] sm:$0xf]
          %v2682 = vld [vmem:[%s5 + $0xdc] sm:$0xf]
          %v2683 = vld [vmem:[%s5 + $0xe0] sm:$0xf]
          %v2684 = vld [vmem:[%s5 + $0xe4] sm:$0xf]
          %v2685 = vld [vmem:[%s5 + $0xe8] sm:$0xf]
          %v2686 = vld [vmem:[%s5 + $0xec] sm:$0xf]
          %v2687 = vld [vmem:[%s5 + $0xf0] sm:$0xf]
          %v2688 = vld [vmem:[%s5 + $0xf4] sm:$0xf]
          %v2689 = vld [vmem:[%s5 + $0xf8] sm:$0xf]
          %v2690 = vld [vmem:[%s5 + $0xfc] sm:$0xf]
          %v2691 = vld [vmem:[%s6] sm:$0x1]
          %v2693 = vperm.slane %v2691, 0
          %v2759 = vunpack.c.l.b16 %v2627
          %v2760 = vunpack.c.l.b16 %v2628
          %v2761 = vunpack.c.l.b16 %v2629
          %v2762 = vunpack.c.l.b16 %v2630
          %v2763 = vunpack.c.l.b16 %v2631
          %v2764 = vunpack.c.l.b16 %v2632
          %v2765 = vunpack.c.l.b16 %v2633
          %v2766 = vunpack.c.l.b16 %v2634
          %v2767 = vunpack.c.l.b16 %v2635
          %v2768 = vunpack.c.l.b16 %v2636
          %v2769 = vunpack.c.l.b16 %v2637
          %v2770 = vunpack.c.l.b16 %v2638
          %v2771 = vunpack.c.l.b16 %v2639
          %v2772 = vunpack.c.l.b16 %v2640
          %v2773 = vunpack.c.l.b16 %v2641
          %v2774 = vunpack.c.l.b16 %v2642
          %v2775 = vunpack.c.l.b16 %v2643
          %v2776 = vunpack.c.l.b16 %v2644
          %v2777 = vunpack.c.l.b16 %v2645
          %v2778 = vunpack.c.l.b16 %v2646
          %v2779 = vunpack.c.l.b16 %v2647
          %v2780 = vunpack.c.l.b16 %v2648
          %v2781 = vunpack.c.l.b16 %v2649
          %v2782 = vunpack.c.l.b16 %v2650
          %v2783 = vunpack.c.l.b16 %v2651
          %v2784 = vunpack.c.l.b16 %v2652
          %v2785 = vunpack.c.l.b16 %v2653
          %v2786 = vunpack.c.l.b16 %v2654
          %v2787 = vunpack.c.l.b16 %v2655
          %v2788 = vunpack.c.l.b16 %v2656
          %v2789 = vunpack.c.l.b16 %v2657
          %v2790 = vunpack.c.l.b16 %v2658
          %v2791 = vunpack.c.l.b16 %v2659
          %v2792 = vunpack.c.l.b16 %v2660
          %v2793 = vunpack.c.l.b16 %v2661
          %v2794 = vunpack.c.l.b16 %v2662
          %v2795 = vunpack.c.l.b16 %v2663
          %v2796 = vunpack.c.l.b16 %v2664
          %v2797 = vunpack.c.l.b16 %v2665
          %v2798 = vunpack.c.l.b16 %v2666
          %v2799 = vunpack.c.l.b16 %v2667
          %v2800 = vunpack.c.l.b16 %v2668
          %v2801 = vunpack.c.l.b16 %v2669
          %v2802 = vunpack.c.l.b16 %v2670
          %v2803 = vunpack.c.l.b16 %v2671
          %v2804 = vunpack.c.l.b16 %v2672
          %v2805 = vunpack.c.l.b16 %v2673
          %v2806 = vunpack.c.l.b16 %v2674
          %v2807 = vunpack.c.l.b16 %v2675
          %v2808 = vunpack.c.l.b16 %v2676
          %v2809 = vunpack.c.l.b16 %v2677
          %v2810 = vunpack.c.l.b16 %v2678
          %v2811 = vunpack.c.l.b16 %v2679
          %v2812 = vunpack.c.l.b16 %v2680
          %v2813 = vunpack.c.l.b16 %v2681
          %v2814 = vunpack.c.l.b16 %v2682
          %v2815 = vunpack.c.l.b16 %v2683
          %v2816 = vunpack.c.l.b16 %v2684
          %v2817 = vunpack.c.l.b16 %v2685
          %v2818 = vunpack.c.l.b16 %v2686
          %v2819 = vunpack.c.l.b16 %v2687
          %v2820 = vunpack.c.l.b16 %v2688
          %v2821 = vunpack.c.l.b16 %v2689
          %v2822 = vunpack.c.l.b16 %v2690
          %v2823 = vpack.c.b16 %v2760, %v2759
          %v2824 = vpack.c.b16 %v2762, %v2761
          %v2825 = vpack.c.b16 %v2764, %v2763
          %v2826 = vpack.c.b16 %v2766, %v2765
          %v2827 = vpack.c.b16 %v2768, %v2767
          %v2828 = vpack.c.b16 %v2770, %v2769
          %v2829 = vpack.c.b16 %v2772, %v2771
          %v2830 = vpack.c.b16 %v2774, %v2773
          %v2831 = vpack.c.b16 %v2776, %v2775
          %v2832 = vpack.c.b16 %v2778, %v2777
          %v2833 = vpack.c.b16 %v2780, %v2779
          %v2834 = vpack.c.b16 %v2782, %v2781
          %v2835 = vpack.c.b16 %v2784, %v2783
          %v2836 = vpack.c.b16 %v2786, %v2785
          %v2837 = vpack.c.b16 %v2788, %v2787
          %v2838 = vpack.c.b16 %v2790, %v2789
          %v2839 = vpack.c.b16 %v2792, %v2791
          %v2840 = vpack.c.b16 %v2794, %v2793
          %v2841 = vpack.c.b16 %v2796, %v2795
          %v2842 = vpack.c.b16 %v2798, %v2797
          %v2843 = vpack.c.b16 %v2800, %v2799
          %v2844 = vpack.c.b16 %v2802, %v2801
          %v2845 = vpack.c.b16 %v2804, %v2803
          %v2846 = vpack.c.b16 %v2806, %v2805
          %v2847 = vpack.c.b16 %v2808, %v2807
          %v2848 = vpack.c.b16 %v2810, %v2809
          %v2849 = vpack.c.b16 %v2812, %v2811
          %v2850 = vpack.c.b16 %v2814, %v2813
          %v2851 = vpack.c.b16 %v2816, %v2815
          %v2852 = vpack.c.b16 %v2818, %v2817
          %v2853 = vpack.c.b16 %v2820, %v2819
          %v2854 = vpack.c.b16 %v2822, %v2821
          %2887 = vmatpush.bf16.msra.mxu0 %v2830
          %2888 = vmatpush.bf16.msra.mxu0 %v2829
          %2889 = vmatpush.bf16.msra.mxu0 %v2828
          %2890 = vmatpush.bf16.msra.mxu0 %v2827
          %2891 = vmatpush.bf16.msra.mxu0 %v2826
          %2892 = vmatpush.bf16.msra.mxu0 %v2825
          %2893 = vmatpush.bf16.msra.mxu0 %v2824
          %2894 = vmatpush.bf16.msra.mxu0 %v2823
          %2895 = vmatmul.bf16.gmra.mxu0 %v2623
          %v2896 = vpop.f32.mrf.mxu0
          %v2897 = vadd.f32 %v2693, %v2896
          %v2898 = vpop.f32.mrf.mxu0
          %2899 = vdwg.mxu0
          %2900 = vmatpush.bf16.msra.mxu0 %v2838
          %2901 = vmatpush.bf16.msra.mxu0 %v2837
          %2902 = vmatpush.bf16.msra.mxu0 %v2836
          %2903 = vmatpush.bf16.msra.mxu0 %v2835
          %2904 = vmatpush.bf16.msra.mxu0 %v2834
          %2905 = vmatpush.bf16.msra.mxu0 %v2833
          %2906 = vmatpush.bf16.msra.mxu0 %v2832
          %2907 = vmatpush.bf16.msra.mxu0 %v2831
          %2908 = vmatmul.bf16.gmra.mxu0 %v2624
          %v2909 = vpop.f32.mrf.mxu0
          %v2910 = vadd.f32 %v2897, %v2909
          %v2911 = vpop.f32.mrf.mxu0
          %2912 = vdwg.mxu0
          %2913 = vmatpush.bf16.msra.mxu0 %v2846
          %2914 = vmatpush.bf16.msra.mxu0 %v2845
          %2915 = vmatpush.bf16.msra.mxu0 %v2844
          %2916 = vmatpush.bf16.msra.mxu0 %v2843
          %2917 = vmatpush.bf16.msra.mxu0 %v2842
          %2918 = vmatpush.bf16.msra.mxu0 %v2841
          %2919 = vmatpush.bf16.msra.mxu0 %v2840
          %2920 = vmatpush.bf16.msra.mxu0 %v2839
          %2921 = vmatmul.bf16.gmra.mxu0 %v2625
          %v2922 = vpop.f32.mrf.mxu0
          %v2923 = vadd.f32 %v2910, %v2922
          %v2924 = vpop.f32.mrf.mxu0
          %2925 = vdwg.mxu0
          %2926 = vmatpush.bf16.msra.mxu0 %v2854
          %2927 = vmatpush.bf16.msra.mxu0 %v2853
          %2928 = vmatpush.bf16.msra.mxu0 %v2852
          %2929 = vmatpush.bf16.msra.mxu0 %v2851
          %2930 = vmatpush.bf16.msra.mxu0 %v2850
          %2931 = vmatpush.bf16.msra.mxu0 %v2849
          %2932 = vmatpush.bf16.msra.mxu0 %v2848
          %2933 = vmatpush.bf16.msra.mxu0 %v2847
          %2934 = vmatmul.bf16.gmra.mxu0 %v2626
          %v2935 = vpop.f32.mrf.mxu0
          %v2936 = vadd.f32 %v2923, %v2935
          %v2937 = vpop.f32.mrf.mxu0
          %2938 = vdwg.mxu0
          %2939 = vst [vmem:[#allocation7] sm:$0x3] %v2936
        $region98: #{tpu_custom_call.1} parent=81 // pred_fallthru
          _
        // Predicated region
        $region99: #{tpu_custom_call.1} parent=81 // pred_check
          %p2940 = pneg %p204
        $region100: #{tpu_custom_call.1} parent=81 // pred_check_branch
          %2942 = sbr.rel (%p2940) target = $region102
        $region101: #{tpu_custom_call.1} parent=81 // pred_region
          %2944 = vsyncadd [#allocation6], 0
          %s2945 = smul.addr %s24, 2
          %s2946 = scalar_lea.hbm %s7, %s2945
          %s2948 = sshll.u32 [#allocation7], 4
          %s2949 = int_to_ptr.vmem [resolvable:$true] %s2948
          %s2950 = sshll.u32 %s2946, 4
          %s2951 = int_to_ptr.hbm [resolvable:$true] %s2950
          %2953 = dma.vmem_to_hbm [thread:$0]  %s2949, 32, %s2951, [#allocation6]
        $region102: #{tpu_custom_call.1} parent=81 // pred_fallthru
          _
        // Predicated region
        $region103: #{tpu_custom_call.1} parent=81 // pred_check
          %p2954 = pneg %p204
        $region104: #{tpu_custom_call.1} parent=81 // pred_check_branch
          %2956 = sbr.rel (%p2954) target = $region106
        $region105: #{tpu_custom_call.1} parent=81 // pred_region
          %2958 = dma.done [#allocation6], 32
        $region106: #{tpu_custom_call.1} parent=81 // pred_fallthru
          _
      $region82: #{tpu_custom_call.1} parent=5 // pred_fallthru
        _
      %p2959 = scmp.le.s32.totalorder 2, %s15
      // Predicated region
      $region107: #{tpu_custom_call.1} parent=5 // pred_check
        %p2960 = pneg %p2959
      $region108: #{tpu_custom_call.1} parent=5 // pred_check_branch
        %2962 = sbr.rel (%p2960) target = $region110
      $region109: #{tpu_custom_call.1} parent=5 // pred_region
        %s2963 = ssub.s32 %s15, 2
      $region110: #{tpu_custom_call.1} parent=5 // pred_fallthru
        _
    $region6: #{tpu_custom_call.1} parent=1 // loop_footer
      %s19 = sadd.s32 1, %s15
    $region7: #{tpu_custom_call.1} parent=1 // loop_footer_branch
      %14 = sbr.rel target = $region3
    $region8: #{tpu_custom_call.1} parent=1 // loop_exit
      _
    %2964 = vsyncpa [#allocation5], 1
    %s2965 = scalar_lea.sflag [#allocation5], 1
    %2966 = vsyncpa %s2965, 1
    %2967 = vsyncpa [#allocation6], 1
    %s2968 = scalar_lea.sflag [#allocation6], 1
    %2969 = vsyncpa %s2968, 1

</llo_original>
